<compile_context>
chip_gen: v7x
topology: tpu7x:2x2x1
jax: 0.10.0
libtpu: 0.0.40
codegen_flags: <defaults>
</compile_context>

<pallas_src>
import numpy as np
import jax
import jax.numpy as jnp
from jax.experimental import pallas as pl
from jax.experimental.pallas import tpu as pltpu


# --------------------------------------------------------------------------------------
# Core kernel: embedding gather + LSTM stack + location-aware attention (single block).
# --------------------------------------------------------------------------------------
def decoder_core_kernel(dec_in_ref,                      # SMEM (B,)  int32
                        ctx_ref, h0_ref, c0_ref,         # VMEM f32
                        attn_ref, kproj_ref, enc_ref,    # VMEM f32 / f32 / bf16
                        mask_ref,                        # VMEM f32
                        emb_hbm_ref,                     # HBM  (V, D) f32, pre-scaled
                        wlstm_ref, blstm_ref,            # VMEM bf16 (L,2D,4D) / f32 (L,4D)
                        wq_ref, mloc_ref, v_ref, batt_ref,
                        hout_ref, cout_ref, ctxout_ref, attnout_ref, feat_ref,
                        x_scratch, attn_pad, emb_sem):
    B, D = ctx_ref.shape
    L = h0_ref.shape[0]
    T = attn_ref.shape[1]
    f32 = jnp.float32
    bf16 = jnp.bfloat16

    # ---- embedding lookup: DMA-gather the B rows from HBM using the SMEM token ids ----
    copies = []
    for b in range(B):
        tok = dec_in_ref[b]
        cp = pltpu.make_async_copy(emb_hbm_ref.at[pl.ds(tok, 1)],
                                   x_scratch.at[pl.ds(b, 1)],
                                   emb_sem.at[b])
        cp.start()
        copies.append(cp)
    for cp in copies:
        cp.wait()
    # emb rows are pre-scaled by sqrt(D); emb_drop is identity in eval mode
    x = x_scratch[...] + ctx_ref[...]                                        # (B, D)

    # ---- stacked LSTM, one step; fused [x, h] @ [Wih; Whh] per layer (gates i,f,g,o) ----
    for l in range(L):
        xh = jnp.concatenate([x, h0_ref[l]], axis=-1).astype(bf16)           # (B, 2D)
        gates = (jnp.dot(xh, wlstm_ref[l], preferred_element_type=f32)
                 + blstm_ref[l][None, :])                                    # (B, 4D)
        i_g = jax.nn.sigmoid(gates[:, 0 * D:1 * D])
        f_g = jax.nn.sigmoid(gates[:, 1 * D:2 * D])
        g_g = jnp.tanh(gates[:, 2 * D:3 * D])
        o_g = jax.nn.sigmoid(gates[:, 3 * D:4 * D])
        c_new = f_g * c0_ref[l] + i_g * g_g
        h_new = o_g * jnp.tanh(c_new)
        hout_ref[l] = h_new
        cout_ref[l] = c_new
        x = h_new
    dec_emb = x                                                              # (B, D)

    # ---- location-aware attention (K projection already hoisted into k_proj) ----
    q_proj = jnp.dot(dec_emb.astype(bf16), wq_ref[...],
                     preferred_element_type=f32)                             # (B, D)

    # location conv (k=3, pad=1) folded with its projection into mloc (3, D); apply it as
    # three zero-padded shifts of attn_prev via a small padded VMEM scratch.
    attn_p = attn_ref[...]
    attn_pad[...] = jnp.zeros((B, T + 2), f32)
    attn_pad[:, 1:T + 1] = attn_p
    a_prev = attn_pad[:, 0:T]                                                # attn[t-1]
    a_next = attn_pad[:, 2:T + 2]                                            # attn[t+1]
    loc = (a_prev[:, :, None] * mloc_ref[0][None, None, :]
           + attn_p[:, :, None] * mloc_ref[1][None, None, :]
           + a_next[:, :, None] * mloc_ref[2][None, None, :])                # (B, T, D)

    e = jnp.tanh(q_proj[:, None, :] + kproj_ref[...] + loc
                 + batt_ref[...][None, :, :])                                # (B, T, D)
    scores = jnp.sum(e * v_ref[...][None, :, :], axis=-1)                    # (B, T)
    scores = jnp.where(mask_ref[...] > 0.5, scores, -1e9)
    scores = scores - jnp.max(scores, axis=-1, keepdims=True)
    ex = jnp.exp(scores)
    attn_new = ex / jnp.maximum(jnp.sum(ex, axis=-1, keepdims=True), 1e-6)   # masked softmax

    # context via a batched MXU contraction (bf16 inputs, f32 accumulation)
    ctx_new = jnp.einsum("bqt,btd->bqd",
                         attn_new[:, None, :].astype(bf16), enc_ref[...],
                         preferred_element_type=f32)[:, 0, :]                # (B, D)

    ctxout_ref[...] = ctx_new
    attnout_ref[...] = attn_new
    feat_ref[...] = ctx_new + dec_emb        # projected to the vocab in the V-tiled kernel


# --------------------------------------------------------------------------------------
# Output projection kernel: feat @ emb^T, tiled over the vocab axis (parallel grid).
# --------------------------------------------------------------------------------------
def output_proj_kernel(feat_ref, embt_ref, out_ref):
    out_ref[...] = jnp.dot(feat_ref[...].astype(jnp.bfloat16), embt_ref[...],
                           preferred_element_type=jnp.float32)


# --------------------------------------------------------------------------------------
# Wrapper
# --------------------------------------------------------------------------------------
@jax.jit
def decoder_step(dec_in, ctx, h0, c0, attn_prev, enc_bf16, enc_mask, k_proj, params):
    B, T = attn_prev.shape
    L, _, D = h0.shape
    V = params["emb_t"].shape[1]

    vspec = pl.BlockSpec(memory_space=pltpu.MemorySpace.VMEM)
    smem_spec = pl.BlockSpec(memory_space=pltpu.MemorySpace.SMEM)
    hbm_spec = pl.BlockSpec(memory_space=pl.ANY)

    core_out_shapes = (
        jax.ShapeDtypeStruct((L, B, D), jnp.float32),   # new h
        jax.ShapeDtypeStruct((L, B, D), jnp.float32),   # new c
        jax.ShapeDtypeStruct((B, D), jnp.float32),      # new ctx
        jax.ShapeDtypeStruct((B, T), jnp.float32),      # new attn
        jax.ShapeDtypeStruct((B, D), jnp.float32),      # feat = ctx + dec_emb
    )
    h_new, c_new, ctx_new, attn_new, feat = pl.pallas_call(
        decoder_core_kernel,
        out_shape=core_out_shapes,
        in_specs=[smem_spec,                       # dec_in (token ids, SMEM)
                  vspec, vspec, vspec,             # ctx, h0, c0
                  vspec, vspec, vspec, vspec,      # attn_prev, k_proj, enc_out(bf16), mask
                  hbm_spec,                        # emb_scaled (stays in HBM, DMA gather)
                  vspec, vspec,                    # w_lstm, b_lstm
                  vspec, vspec, vspec, vspec],     # wq_t, m_loc, v_att, b_att
        out_specs=tuple([vspec] * 5),
        scratch_shapes=[pltpu.VMEM((B, D), jnp.float32),       # gathered embedding rows
                        pltpu.VMEM((B, T + 2), jnp.float32),   # zero-padded attn (conv shifts)
                        pltpu.SemaphoreType.DMA((B,))],
        # write the recurrent state back in place (h0->h, c0->c, ctx->ctx, attn->attn)
        input_output_aliases={2: 0, 3: 1, 1: 2, 4: 3},
    )(dec_in, ctx, h0, c0, attn_prev, k_proj, enc_bf16, enc_mask,
      params["emb_scaled"], params["w_lstm"], params["b_lstm"],
      params["wq_t"], params["m_loc"], params["v_att"], params["b_att"])

    # shared-weight output projection, tiled over V with a parallel grid axis
    tv = 128 if V % 128 == 0 else V
    dec_out = pl.pallas_call(
        output_proj_kernel,
        out_shape=jax.ShapeDtypeStruct((B, V), jnp.float32),
        grid=(V // tv,),
        in_specs=[pl.BlockSpec((B, D), lambda j: (0, 0)),
                  pl.BlockSpec((D, tv), lambda j: (0, j))],
        out_specs=pl.BlockSpec((B, tv), lambda j: (0, j)),
        compiler_params=pltpu.CompilerParams(dimension_semantics=("parallel",)),
        cost_estimate=pl.CostEstimate(flops=2 * B * D * V, transcendentals=0,
                                      bytes_accessed=B * D * 4 + D * V * 2 + B * V * 4),
    )(feat, params["emb_t"])

    return dec_out, h_new, c_new, ctx_new, attn_new


# --------------------------------------------------------------------------------------
# Pure-JAX reference (same math, same bf16 weight quantization) for correctness checking.
# --------------------------------------------------------------------------------------
def decoder_step_ref(dec_in, ctx, h0, c0, attn_prev, enc_bf16, enc_mask, k_proj, params):
    f32, bf16 = jnp.float32, jnp.bfloat16
    B, T = attn_prev.shape
    L, _, D = h0.shape
    x = params["emb_scaled"][dec_in] + ctx
    w_l = params["w_lstm"].astype(f32)
    hs, cs = [], []
    for l in range(L):
        xh = jnp.concatenate([x, h0[l]], axis=-1).astype(bf16).astype(f32)
        gates = xh @ w_l[l] + params["b_lstm"][l]
        i_g, f_g, g_g, o_g = jnp.split(gates, 4, axis=-1)
        i_g, f_g, o_g = jax.nn.sigmoid(i_g), jax.nn.sigmoid(f_g), jax.nn.sigmoid(o_g)
        g_g = jnp.tanh(g_g)
        c_new = f_g * c0[l] + i_g * g_g
        h_new = o_g * jnp.tanh(c_new)
        hs.append(h_new)
        cs.append(c_new)
        x = h_new
    dec_emb = x
    q = dec_emb.astype(bf16).astype(f32) @ params["wq_t"].astype(f32)
    ap = jnp.pad(attn_prev, ((0, 0), (1, 1)))
    m = params["m_loc"]
    loc = (ap[:, :T, None] * m[0] + ap[:, 1:T + 1, None] * m[1] + ap[:, 2:, None] * m[2])
    e = jnp.tanh(q[:, None, :] + k_proj + loc + params["b_att"][None, :, :])
    scores = jnp.sum(e * params["v_att"][None, :, :], axis=-1)
    scores = jnp.where(enc_mask > 0.5, scores, -1e9)
    scores = scores - jnp.max(scores, axis=-1, keepdims=True)
    ex = jnp.exp(scores)
    attn_new = ex / jnp.maximum(jnp.sum(ex, axis=-1, keepdims=True), 1e-6)
    ctx_new = jnp.einsum("bt,btd->bd",
                         attn_new.astype(bf16).astype(f32), enc_bf16.astype(f32))
    feat = ctx_new + dec_emb
    dec_out = feat.astype(bf16).astype(f32) @ params["emb_t"].astype(f32)
    return dec_out, jnp.stack(hs), jnp.stack(cs), ctx_new, attn_new


if __name__ == "__main__":
    B, L, D, V, T = 2, 2, 128, 256, 16          # batch, n_layer, d_model, n_vocab, enc len
    F_LOC, K_LOC = 256, 3                       # location conv: 256 filters, kernel 3, pad 1

    key = jax.random.PRNGKey(0)
    ks = jax.random.split(key, 20)

    def nrm(k, shape, s=0.1):
        return jax.random.normal(k, shape, dtype=jnp.float32) * s

    # ----- deterministic parameters -----
    emb = nrm(ks[0], (V, D)).at[0].set(0.0)     # padding_idx=0 -> zero row
    w_ih = nrm(ks[1], (L, 4 * D, D))
    w_hh = nrm(ks[2], (L, 4 * D, D))
    b_ih = nrm(ks[3], (L, 4 * D), 0.05)
    b_hh = nrm(ks[4], (L, 4 * D), 0.05)
    wq = nrm(ks[5], (D, D))
    wk = nrm(ks[6], (D, D))
    conv_w = nrm(ks[7], (F_LOC, K_LOC), 0.05)   # Conv1d(1, 256, k=3, pad=1, bias=False)
    wf = nrm(ks[8], (D, F_LOC), 0.05)           # location feature -> attention dim
    v_att = nrm(ks[9], (1, D))
    b_att = nrm(ks[10], (1, D), 0.05)

    scale = float(D) ** 0.5                     # d_emb == d_model -> scale = sqrt(d_model)
    w_cat = jnp.concatenate([jnp.transpose(w_ih, (0, 2, 1)),
                             jnp.transpose(w_hh, (0, 2, 1))], axis=1)   # (L, 2D, 4D)
    m_loc = (wf @ conv_w).T                      # (K, D): folded conv + location projection

    params = {
        "emb_scaled": emb * scale,               # f32 (V, D): lookup table (HBM in kernel)
        "emb_t": emb.T.astype(jnp.bfloat16),     # (D, V): shared output weight, bf16
        "w_lstm": w_cat.astype(jnp.bfloat16),    # fused [Wih; Whh] per layer, bf16
        "b_lstm": b_ih + b_hh,                   # (L, 4D) f32
        "wq_t": wq.T.astype(jnp.bfloat16),
        "wk_t": wk.T,                            # only used in the hoisted k_proj precompute
        "m_loc": m_loc,                          # (3, D) f32
        "v_att": v_att,
        "b_att": b_att,
    }

    # ----- deterministic inputs -----
    dec_in = jnp.array([3, 7], dtype=jnp.int32)
    ctx0 = nrm(ks[11], (B, D))
    h0 = nrm(ks[12], (L, B, D))
    c0 = nrm(ks[13], (L, B, D))
    enc_out = nrm(ks[14], (B, T, D), 0.5)
    lens = np.array([T, 11])
    enc_mask = jnp.asarray((np.arange(T)[None, :] < lens[:, None]).astype(np.float32))
    raw = jax.random.uniform(ks[15], (B, T), dtype=jnp.float32)
    attn_prev = jax.nn.softmax(jnp.where(enc_mask > 0, raw, -1e9), axis=-1)

    # hoisted once per utterance (encoder side): K projection + bf16 copy of the memory
    k_proj = enc_out @ params["wk_t"]            # (B, T, D) f32
    enc_bf16 = enc_out.astype(jnp.bfloat16)

    # ----- run kernels -----
    outs = decoder_step(dec_in, ctx0, h0, c0, attn_prev, enc_bf16, enc_mask, k_proj, params)
    outs = jax.block_until_ready(outs)

    # ----- check against pure-JAX reference -----
    refs = decoder_step_ref(dec_in, ctx0, h0, c0, attn_prev, enc_bf16, enc_mask, k_proj, params)
    names = ["dec_out", "h", "c", "ctx", "attn"]
    for name, a, b in zip(names, outs, refs):
        assert a.shape == b.shape, (name, a.shape, b.shape)
        assert jnp.allclose(a, b, atol=1e-2, rtol=1e-2), f"mismatch in {name}"

    print("KERNEL_OK")
</pallas_src>

<mosaic_0001>
module attributes {stable_mosaic.version = 11 : i64} {
  func.func @output_proj_kernel(%arg0: i32, %arg1: memref<2x128xf32, #tpu.memory_space<vmem>>, %arg2: memref<128x128xbf16, #tpu.memory_space<vmem>>, %arg3: memref<2x128xf32, #tpu.memory_space<vmem>>) attributes {dimension_semantics = [#tpu.dimension_semantics<parallel>], iteration_bounds = array<i64: 2>, scalar_prefetch = 0 : i64, scratch_operands = 0 : i64, tpu.core_type = #tpu.core_type<tc>, window_params = [{pipeline_mode = #tpu.pipeline_mode<synchronous>, transform_indices = @transform_0, window_bounds = array<i64: 2, 128>}, {transform_indices = @transform_1, window_bounds = array<i64: 128, 128>}, {transform_indices = @transform_2, window_bounds = array<i64: 2, 128>}]} {
    %c0 = arith.constant 0 : index
    %c0_0 = arith.constant 0 : index
    %0 = vector.load %arg1[%c0, %c0_0] : memref<2x128xf32, #tpu.memory_space<vmem>>, vector<2x128xf32>
    %1 = arith.truncf %0 : vector<2x128xf32> to vector<2x128xbf16>
    %c0_1 = arith.constant 0 : index
    %c0_2 = arith.constant 0 : index
    %2 = vector.load %arg2[%c0_1, %c0_2] : memref<128x128xbf16, #tpu.memory_space<vmem>>, vector<128x128xbf16>
    %cst = arith.constant dense<0.000000e+00> : vector<2x128xf32>
    %3 = tpu.matmul %1, %2, %cst {dimension_numbers = #tpu.dot_dimension_numbers<[1], [0], [0], [1], [0, 0, 1, 1], [], []>} : vector<2x128xbf16>, vector<128x128xbf16>, vector<2x128xf32> -> vector<2x128xf32>
    %c0_3 = arith.constant 0 : index
    %c0_4 = arith.constant 0 : index
    %4 = vector.load %arg3[%c0_3, %c0_4] : memref<2x128xf32, #tpu.memory_space<vmem>>, vector<2x128xf32>
    tpu.vector_store %arg3[%c0_3, %c0_4], %3 {strides = array<i32>} : memref<2x128xf32, #tpu.memory_space<vmem>>, vector<2x128xf32>,
    return
  }
  func.func @transform_0(%arg0: i32) -> (i32, i32) {
    %c0_i32 = arith.constant 0 : i32
    %c0_i32_0 = arith.constant 0 : i32
    %c0_i32_1 = arith.constant 0 : i32
    return %c0_i32, %c0_i32_0 : i32, i32
  }
  func.func @transform_1(%arg0: i32) -> (i32, i32) {
    %c0_i32 = arith.constant 0 : i32
    %c0_i32_0 = arith.constant 0 : i32
    return %c0_i32, %arg0 : i32, i32
  }
  func.func @transform_2(%arg0: i32) -> (i32, i32) {
    %c0_i32 = arith.constant 0 : i32
    %c0_i32_0 = arith.constant 0 : i32
    return %c0_i32, %arg0 : i32, i32
  }
}

module attributes {stable_mosaic.version = 11 : i64} {
  func.func @decoder_core_kernel(%arg0: memref<2xi32, #tpu.memory_space<smem>>, %arg1: memref<2x128xf32, #tpu.memory_space<vmem>>, %arg2: memref<2x2x128xf32, #tpu.memory_space<vmem>>, %arg3: memref<2x2x128xf32, #tpu.memory_space<vmem>>, %arg4: memref<2x16xf32, #tpu.memory_space<vmem>>, %arg5: memref<2x16x128xf32, #tpu.memory_space<vmem>>, %arg6: memref<2x16x128xbf16, #tpu.memory_space<vmem>>, %arg7: memref<2x16xf32, #tpu.memory_space<vmem>>, %arg8: memref<256x128xf32, #tpu.memory_space<any>>, %arg9: memref<2x256x512xbf16, #tpu.memory_space<vmem>>, %arg10: memref<2x512xf32, #tpu.memory_space<vmem>>, %arg11: memref<128x128xbf16, #tpu.memory_space<vmem>>, %arg12: memref<3x128xf32, #tpu.memory_space<vmem>>, %arg13: memref<1x128xf32, #tpu.memory_space<vmem>>, %arg14: memref<1x128xf32, #tpu.memory_space<vmem>>, %arg15: memref<2x2x128xf32, #tpu.memory_space<vmem>>, %arg16: memref<2x2x128xf32, #tpu.memory_space<vmem>>, %arg17: memref<2x128xf32, #tpu.memory_space<vmem>>, %arg18: memref<2x16xf32, #tpu.memory_space<vmem>>, %arg19: memref<2x128xf32, #tpu.memory_space<vmem>>, %arg20: memref<2x128xf32, #tpu.memory_space<vmem>>, %arg21: memref<2x18xf32, #tpu.memory_space<vmem>>, %arg22: memref<2x!tpu.dma_semaphore, #tpu.memory_space<semaphore_mem>>) attributes {dimension_semantics = [], scalar_prefetch = 0 : i64, scratch_operands = 3 : i64, tpu.core_type = #tpu.core_type<tc>} {
    %c0 = arith.constant 0 : index
    %0 = memref.load %arg0[%c0] : memref<2xi32, #tpu.memory_space<smem>>
    %c0_i32 = arith.constant 0 : i32
    %c0_i32_0 = arith.constant 0 : i32
    %1 = tpu.memref_slice %arg8[%0, %c0_i32_0] : memref<256x128xf32, #tpu.memory_space<any>> -> memref<1x128xf32, #tpu.memory_space<any>>
    %c0_i32_1 = arith.constant 0 : i32
    %c0_i32_2 = arith.constant 0 : i32
    %2 = tpu.memref_slice %arg20[%c0_i32_1, %c0_i32_2] : memref<2x128xf32, #tpu.memory_space<vmem>> -> memref<1x128xf32, #tpu.memory_space<vmem>>
    %3 = tpu.memref_slice %arg22[%c0_i32] : memref<2x!tpu.dma_semaphore, #tpu.memory_space<semaphore_mem>> -> memref<1x!tpu.dma_semaphore, #tpu.memory_space<semaphore_mem>>
    %4 = tpu.memref_squeeze %3 : memref<1x!tpu.dma_semaphore, #tpu.memory_space<semaphore_mem>> -> memref<!tpu.dma_semaphore, #tpu.memory_space<semaphore_mem>>
    tpu.enqueue_dma source(%1 : memref<1x128xf32, #tpu.memory_space<any>>) target(%2 : memref<1x128xf32, #tpu.memory_space<vmem>>) target_semaphore(%4 : memref<!tpu.dma_semaphore, #tpu.memory_space<semaphore_mem>>)
    %c1 = arith.constant 1 : index
    %5 = memref.load %arg0[%c1] : memref<2xi32, #tpu.memory_space<smem>>
    %c1_i32 = arith.constant 1 : i32
    %c0_i32_3 = arith.constant 0 : i32
    %6 = tpu.memref_slice %arg8[%5, %c0_i32_3] : memref<256x128xf32, #tpu.memory_space<any>> -> memref<1x128xf32, #tpu.memory_space<any>>
    %c1_i32_4 = arith.constant 1 : i32
    %c0_i32_5 = arith.constant 0 : i32
    %7 = tpu.memref_slice %arg20[%c1_i32_4, %c0_i32_5] : memref<2x128xf32, #tpu.memory_space<vmem>> -> memref<1x128xf32, #tpu.memory_space<vmem>>
    %8 = tpu.memref_slice %arg22[%c1_i32] : memref<2x!tpu.dma_semaphore, #tpu.memory_space<semaphore_mem>> -> memref<1x!tpu.dma_semaphore, #tpu.memory_space<semaphore_mem>>
    %9 = tpu.memref_squeeze %8 : memref<1x!tpu.dma_semaphore, #tpu.memory_space<semaphore_mem>> -> memref<!tpu.dma_semaphore, #tpu.memory_space<semaphore_mem>>
    tpu.enqueue_dma source(%6 : memref<1x128xf32, #tpu.memory_space<any>>) target(%7 : memref<1x128xf32, #tpu.memory_space<vmem>>) target_semaphore(%9 : memref<!tpu.dma_semaphore, #tpu.memory_space<semaphore_mem>>)
    %c0_i32_6 = arith.constant 0 : i32
    %c0_i32_7 = arith.constant 0 : i32
    %10 = tpu.memref_slice %arg8[%0, %c0_i32_7] : memref<256x128xf32, #tpu.memory_space<any>> -> memref<1x128xf32, #tpu.memory_space<any>>
    %c0_i32_8 = arith.constant 0 : i32
    %c0_i32_9 = arith.constant 0 : i32
    %11 = tpu.memref_slice %arg20[%c0_i32_8, %c0_i32_9] : memref<2x128xf32, #tpu.memory_space<vmem>> -> memref<1x128xf32, #tpu.memory_space<vmem>>
    %12 = tpu.memref_slice %arg22[%c0_i32_6] : memref<2x!tpu.dma_semaphore, #tpu.memory_space<semaphore_mem>> -> memref<1x!tpu.dma_semaphore, #tpu.memory_space<semaphore_mem>>
    %13 = tpu.memref_squeeze %12 : memref<1x!tpu.dma_semaphore, #tpu.memory_space<semaphore_mem>> -> memref<!tpu.dma_semaphore, #tpu.memory_space<semaphore_mem>>
    tpu.wait_dma2 semaphore(%13 : memref<!tpu.dma_semaphore, #tpu.memory_space<semaphore_mem>>) src(%10 : memref<1x128xf32, #tpu.memory_space<any>>) dst(%11 : memref<1x128xf32, #tpu.memory_space<vmem>>)
    %c1_i32_10 = arith.constant 1 : i32
    %c0_i32_11 = arith.constant 0 : i32
    %14 = tpu.memref_slice %arg8[%5, %c0_i32_11] : memref<256x128xf32, #tpu.memory_space<any>> -> memref<1x128xf32, #tpu.memory_space<any>>
    %c1_i32_12 = arith.constant 1 : i32
    %c0_i32_13 = arith.constant 0 : i32
    %15 = tpu.memref_slice %arg20[%c1_i32_12, %c0_i32_13] : memref<2x128xf32, #tpu.memory_space<vmem>> -> memref<1x128xf32, #tpu.memory_space<vmem>>
    %16 = tpu.memref_slice %arg22[%c1_i32_10] : memref<2x!tpu.dma_semaphore, #tpu.memory_space<semaphore_mem>> -> memref<1x!tpu.dma_semaphore, #tpu.memory_space<semaphore_mem>>
    %17 = tpu.memref_squeeze %16 : memref<1x!tpu.dma_semaphore, #tpu.memory_space<semaphore_mem>> -> memref<!tpu.dma_semaphore, #tpu.memory_space<semaphore_mem>>
    tpu.wait_dma2 semaphore(%17 : memref<!tpu.dma_semaphore, #tpu.memory_space<semaphore_mem>>) src(%14 : memref<1x128xf32, #tpu.memory_space<any>>) dst(%15 : memref<1x128xf32, #tpu.memory_space<vmem>>)
    %c0_14 = arith.constant 0 : index
    %c0_15 = arith.constant 0 : index
    %18 = vector.load %arg20[%c0_14, %c0_15] : memref<2x128xf32, #tpu.memory_space<vmem>>, vector<2x128xf32>
    %c0_16 = arith.constant 0 : index
    %c0_17 = arith.constant 0 : index
    %19 = vector.load %arg1[%c0_16, %c0_17] : memref<2x128xf32, #tpu.memory_space<vmem>>, vector<2x128xf32>
    %20 = arith.addf %18, %19 : vector<2x128xf32>
    %c0_18 = arith.constant 0 : index
    %c0_19 = arith.constant 0 : index
    %c0_20 = arith.constant 0 : index
    %21 = vector.load %arg2[%c0_18, %c0_19, %c0_20] : memref<2x2x128xf32, #tpu.memory_space<vmem>>, vector<1x2x128xf32>
    %22 = vector.shape_cast %21 : vector<1x2x128xf32> to vector<2x128xf32>
    %23 = tpu.concatenate %20, %22 in 1 : vector<2x128xf32>, vector<2x128xf32> -> vector<2x256xf32>
    %24 = arith.truncf %23 : vector<2x256xf32> to vector<2x256xbf16>
    %c0_21 = arith.constant 0 : index
    %c0_22 = arith.constant 0 : index
    %c0_23 = arith.constant 0 : index
    %25 = vector.load %arg9[%c0_21, %c0_22, %c0_23] : memref<2x256x512xbf16, #tpu.memory_space<vmem>>, vector<1x256x512xbf16>
    %26 = vector.shape_cast %25 : vector<1x256x512xbf16> to vector<256x512xbf16>
    %cst = arith.constant dense<0.000000e+00> : vector<2x512xf32>
    %27 = tpu.matmul %24, %26, %cst {dimension_numbers = #tpu.dot_dimension_numbers<[1], [0], [0], [1], [0, 0, 1, 1], [], []>} : vector<2x256xbf16>, vector<256x512xbf16>, vector<2x512xf32> -> vector<2x512xf32>
    %c0_24 = arith.constant 0 : index
    %c0_25 = arith.constant 0 : index
    %28 = vector.load %arg10[%c0_24, %c0_25] : memref<2x512xf32, #tpu.memory_space<vmem>>, vector<1x512xf32>
    %29 = vector.shape_cast %28 : vector<1x512xf32> to vector<512xf32>
    %30 = vector.shape_cast %29 : vector<512xf32> to vector<1x512xf32>
    %31 = vector.broadcast %30 : vector<1x512xf32> to vector<2x512xf32>
    %32 = arith.addf %27, %31 : vector<2x512xf32>
    %33 = vector.extract_strided_slice %32 {offsets = [0, 0], sizes = [2, 128], strides = [1, 1]} : vector<2x512xf32> to vector<2x128xf32>
    %34 = arith.negf %33 : vector<2x128xf32>
    %35 = math.exp %34 : vector<2x128xf32>
    %cst_26 = arith.constant 1.000000e+00 : f32
    %36 = vector.broadcast %cst_26 : f32 to vector<2x128xf32>
    %37 = arith.addf %36, %35 : vector<2x128xf32>
    %38 = arith.divf %36, %37 : vector<2x128xf32>
    %39 = vector.extract_strided_slice %32 {offsets = [0, 128], sizes = [2, 128], strides = [1, 1]} : vector<2x512xf32> to vector<2x128xf32>
    %40 = arith.negf %39 : vector<2x128xf32>
    %41 = math.exp %40 : vector<2x128xf32>
    %cst_27 = arith.constant 1.000000e+00 : f32
    %42 = vector.broadcast %cst_27 : f32 to vector<2x128xf32>
    %43 = arith.addf %42, %41 : vector<2x128xf32>
    %44 = arith.divf %42, %43 : vector<2x128xf32>
    %45 = vector.extract_strided_slice %32 {offsets = [0, 256], sizes = [2, 128], strides = [1, 1]} : vector<2x512xf32> to vector<2x128xf32>
    %46 = math.tanh %45 : vector<2x128xf32>
    %47 = vector.extract_strided_slice %32 {offsets = [0, 384], sizes = [2, 128], strides = [1, 1]} : vector<2x512xf32> to vector<2x128xf32>
    %48 = arith.negf %47 : vector<2x128xf32>
    %49 = math.exp %48 : vector<2x128xf32>
    %cst_28 = arith.constant 1.000000e+00 : f32
    %50 = vector.broadcast %cst_28 : f32 to vector<2x128xf32>
    %51 = arith.addf %50, %49 : vector<2x128xf32>
    %52 = arith.divf %50, %51 : vector<2x128xf32>
    %c0_29 = arith.constant 0 : index
    %c0_30 = arith.constant 0 : index
    %c0_31 = arith.constant 0 : index
    %53 = vector.load %arg3[%c0_29, %c0_30, %c0_31] : memref<2x2x128xf32, #tpu.memory_space<vmem>>, vector<1x2x128xf32>
    %54 = vector.shape_cast %53 : vector<1x2x128xf32> to vector<2x128xf32>
    %55 = arith.mulf %44, %54 : vector<2x128xf32>
    %56 = arith.mulf %38, %46 : vector<2x128xf32>
    %57 = arith.addf %55, %56 : vector<2x128xf32>
    %58 = math.tanh %57 : vector<2x128xf32>
    %59 = arith.mulf %52, %58 : vector<2x128xf32>
    %c0_32 = arith.constant 0 : index
    %c0_33 = arith.constant 0 : index
    %c0_34 = arith.constant 0 : index
    %60 = vector.load %arg15[%c0_32, %c0_33, %c0_34] : memref<2x2x128xf32, #tpu.memory_space<vmem>>, vector<1x2x128xf32>
    %61 = vector.shape_cast %60 : vector<1x2x128xf32> to vector<2x128xf32>
    %62 = vector.shape_cast %59 : vector<2x128xf32> to vector<1x2x128xf32>
    tpu.vector_store %arg15[%c0_32, %c0_33, %c0_34], %62 {strides = array<i32>} : memref<2x2x128xf32, #tpu.memory_space<vmem>>, vector<1x2x128xf32>,
    %c0_35 = arith.constant 0 : index
    %c0_36 = arith.constant 0 : index
    %c0_37 = arith.constant 0 : index
    %63 = vector.load %arg16[%c0_35, %c0_36, %c0_37] : memref<2x2x128xf32, #tpu.memory_space<vmem>>, vector<1x2x128xf32>
    %64 = vector.shape_cast %63 : vector<1x2x128xf32> to vector<2x128xf32>
    %65 = vector.shape_cast %57 : vector<2x128xf32> to vector<1x2x128xf32>
    tpu.vector_store %arg16[%c0_35, %c0_36, %c0_37], %65 {strides = array<i32>} : memref<2x2x128xf32, #tpu.memory_space<vmem>>, vector<1x2x128xf32>,
    %c1_38 = arith.constant 1 : index
    %c0_39 = arith.constant 0 : index
    %c0_40 = arith.constant 0 : index
    %66 = vector.load %arg2[%c1_38, %c0_39, %c0_40] : memref<2x2x128xf32, #tpu.memory_space<vmem>>, vector<1x2x128xf32>
    %67 = vector.shape_cast %66 : vector<1x2x128xf32> to vector<2x128xf32>
    %68 = tpu.concatenate %59, %67 in 1 : vector<2x128xf32>, vector<2x128xf32> -> vector<2x256xf32>
    %69 = arith.truncf %68 : vector<2x256xf32> to vector<2x256xbf16>
    %c1_41 = arith.constant 1 : index
    %c0_42 = arith.constant 0 : index
    %c0_43 = arith.constant 0 : index
    %70 = vector.load %arg9[%c1_41, %c0_42, %c0_43] : memref<2x256x512xbf16, #tpu.memory_space<vmem>>, vector<1x256x512xbf16>
    %71 = vector.shape_cast %70 : vector<1x256x512xbf16> to vector<256x512xbf16>
    %cst_44 = arith.constant dense<0.000000e+00> : vector<2x512xf32>
    %72 = tpu.matmul %69, %71, %cst_44 {dimension_numbers = #tpu.dot_dimension_numbers<[1], [0], [0], [1], [0, 0, 1, 1], [], []>} : vector<2x256xbf16>, vector<256x512xbf16>, vector<2x512xf32> -> vector<2x512xf32>
    %c1_45 = arith.constant 1 : index
    %c0_46 = arith.constant 0 : index
    %73 = vector.load %arg10[%c1_45, %c0_46] : memref<2x512xf32, #tpu.memory_space<vmem>>, vector<1x512xf32>
    %74 = vector.shape_cast %73 : vector<1x512xf32> to vector<512xf32>
    %75 = vector.shape_cast %74 : vector<512xf32> to vector<1x512xf32>
    %76 = vector.broadcast %75 : vector<1x512xf32> to vector<2x512xf32>
    %77 = arith.addf %72, %76 : vector<2x512xf32>
    %78 = vector.extract_strided_slice %77 {offsets = [0, 0], sizes = [2, 128], strides = [1, 1]} : vector<2x512xf32> to vector<2x128xf32>
    %79 = arith.negf %78 : vector<2x128xf32>
    %80 = math.exp %79 : vector<2x128xf32>
    %cst_47 = arith.constant 1.000000e+00 : f32
    %81 = vector.broadcast %cst_47 : f32 to vector<2x128xf32>
    %82 = arith.addf %81, %80 : vector<2x128xf32>
    %83 = arith.divf %81, %82 : vector<2x128xf32>
    %84 = vector.extract_strided_slice %77 {offsets = [0, 128], sizes = [2, 128], strides = [1, 1]} : vector<2x512xf32> to vector<2x128xf32>
    %85 = arith.negf %84 : vector<2x128xf32>
    %86 = math.exp %85 : vector<2x128xf32>
    %cst_48 = arith.constant 1.000000e+00 : f32
    %87 = vector.broadcast %cst_48 : f32 to vector<2x128xf32>
    %88 = arith.addf %87, %86 : vector<2x128xf32>
    %89 = arith.divf %87, %88 : vector<2x128xf32>
    %90 = vector.extract_strided_slice %77 {offsets = [0, 256], sizes = [2, 128], strides = [1, 1]} : vector<2x512xf32> to vector<2x128xf32>
    %91 = math.tanh %90 : vector<2x128xf32>
    %92 = vector.extract_strided_slice %77 {offsets = [0, 384], sizes = [2, 128], strides = [1, 1]} : vector<2x512xf32> to vector<2x128xf32>
    %93 = arith.negf %92 : vector<2x128xf32>
    %94 = math.exp %93 : vector<2x128xf32>
    %cst_49 = arith.constant 1.000000e+00 : f32
    %95 = vector.broadcast %cst_49 : f32 to vector<2x128xf32>
    %96 = arith.addf %95, %94 : vector<2x128xf32>
    %97 = arith.divf %95, %96 : vector<2x128xf32>
    %c1_50 = arith.constant 1 : index
    %c0_51 = arith.constant 0 : index
    %c0_52 = arith.constant 0 : index
    %98 = vector.load %arg3[%c1_50, %c0_51, %c0_52] : memref<2x2x128xf32, #tpu.memory_space<vmem>>, vector<1x2x128xf32>
    %99 = vector.shape_cast %98 : vector<1x2x128xf32> to vector<2x128xf32>
    %100 = arith.mulf %89, %99 : vector<2x128xf32>
    %101 = arith.mulf %83, %91 : vector<2x128xf32>
    %102 = arith.addf %100, %101 : vector<2x128xf32>
    %103 = math.tanh %102 : vector<2x128xf32>
    %104 = arith.mulf %97, %103 : vector<2x128xf32>
    %c1_53 = arith.constant 1 : index
    %c0_54 = arith.constant 0 : index
    %c0_55 = arith.constant 0 : index
    %105 = vector.load %arg15[%c1_53, %c0_54, %c0_55] : memref<2x2x128xf32, #tpu.memory_space<vmem>>, vector<1x2x128xf32>
    %106 = vector.shape_cast %105 : vector<1x2x128xf32> to vector<2x128xf32>
    %107 = vector.shape_cast %104 : vector<2x128xf32> to vector<1x2x128xf32>
    tpu.vector_store %arg15[%c1_53, %c0_54, %c0_55], %107 {strides = array<i32>} : memref<2x2x128xf32, #tpu.memory_space<vmem>>, vector<1x2x128xf32>,
    %c1_56 = arith.constant 1 : index
    %c0_57 = arith.constant 0 : index
    %c0_58 = arith.constant 0 : index
    %108 = vector.load %arg16[%c1_56, %c0_57, %c0_58] : memref<2x2x128xf32, #tpu.memory_space<vmem>>, vector<1x2x128xf32>
    %109 = vector.shape_cast %108 : vector<1x2x128xf32> to vector<2x128xf32>
    %110 = vector.shape_cast %102 : vector<2x128xf32> to vector<1x2x128xf32>
    tpu.vector_store %arg16[%c1_56, %c0_57, %c0_58], %110 {strides = array<i32>} : memref<2x2x128xf32, #tpu.memory_space<vmem>>, vector<1x2x128xf32>,
    %111 = arith.truncf %104 : vector<2x128xf32> to vector<2x128xbf16>
    %c0_59 = arith.constant 0 : index
    %c0_60 = arith.constant 0 : index
    %112 = vector.load %arg11[%c0_59, %c0_60] : memref<128x128xbf16, #tpu.memory_space<vmem>>, vector<128x128xbf16>
    %cst_61 = arith.constant dense<0.000000e+00> : vector<2x128xf32>
    %113 = tpu.matmul %111, %112, %cst_61 {dimension_numbers = #tpu.dot_dimension_numbers<[1], [0], [0], [1], [0, 0, 1, 1], [], []>} : vector<2x128xbf16>, vector<128x128xbf16>, vector<2x128xf32> -> vector<2x128xf32>
    %c0_62 = arith.constant 0 : index
    %c0_63 = arith.constant 0 : index
    %114 = vector.load %arg4[%c0_62, %c0_63] : memref<2x16xf32, #tpu.memory_space<vmem>>, vector<2x16xf32>
    %cst_64 = arith.constant 0.000000e+00 : f32
    %115 = vector.broadcast %cst_64 : f32 to vector<2x18xf32>
    %c0_65 = arith.constant 0 : index
    %c0_66 = arith.constant 0 : index
    %116 = vector.load %arg21[%c0_65, %c0_66] : memref<2x18xf32, #tpu.memory_space<vmem>>, vector<2x18xf32>
    tpu.vector_store %arg21[%c0_65, %c0_66], %115 {strides = array<i32>} : memref<2x18xf32, #tpu.memory_space<vmem>>, vector<2x18xf32>,
    %c0_67 = arith.constant 0 : index
    %c1_68 = arith.constant 1 : index
    %117 = vector.load %arg21[%c0_67, %c1_68] : memref<2x18xf32, #tpu.memory_space<vmem>>, vector<2x16xf32>
    tpu.vector_store %arg21[%c0_67, %c1_68], %114 {strides = array<i32>} : memref<2x18xf32, #tpu.memory_space<vmem>>, vector<2x16xf32>,
    %c0_69 = arith.constant 0 : index
    %c0_70 = arith.constant 0 : index
    %118 = vector.load %arg21[%c0_69, %c0_70] : memref<2x18xf32, #tpu.memory_space<vmem>>, vector<2x16xf32>
    %c0_71 = arith.constant 0 : index
    %c2 = arith.constant 2 : index
    %119 = vector.load %arg21[%c0_71, %c2] : memref<2x18xf32, #tpu.memory_space<vmem>>, vector<2x16xf32>
    %120 = vector.shape_cast %118 : vector<2x16xf32> to vector<2x16x1xf32>
    %c0_72 = arith.constant 0 : index
    %c0_73 = arith.constant 0 : index
    %121 = vector.load %arg12[%c0_72, %c0_73] : memref<3x128xf32, #tpu.memory_space<vmem>>, vector<1x128xf32>
    %122 = vector.shape_cast %121 : vector<1x128xf32> to vector<128xf32>
    %123 = vector.shape_cast %122 : vector<128xf32> to vector<1x1x128xf32>
    %124 = vector.broadcast %120 : vector<2x16x1xf32> to vector<2x16x128xf32>
    %125 = vector.broadcast %123 : vector<1x1x128xf32> to vector<2x16x128xf32>
    %126 = arith.mulf %124, %125 : vector<2x16x128xf32>
    %127 = vector.shape_cast %114 : vector<2x16xf32> to vector<2x16x1xf32>
    %c1_74 = arith.constant 1 : index
    %c0_75 = arith.constant 0 : index
    %128 = vector.load %arg12[%c1_74, %c0_75] : memref<3x128xf32, #tpu.memory_space<vmem>>, vector<1x128xf32>
    %129 = vector.shape_cast %128 : vector<1x128xf32> to vector<128xf32>
    %130 = vector.shape_cast %129 : vector<128xf32> to vector<1x1x128xf32>
    %131 = vector.broadcast %127 : vector<2x16x1xf32> to vector<2x16x128xf32>
    %132 = vector.broadcast %130 : vector<1x1x128xf32> to vector<2x16x128xf32>
    %133 = arith.mulf %131, %132 : vector<2x16x128xf32>
    %134 = arith.addf %126, %133 : vector<2x16x128xf32>
    %135 = vector.shape_cast %119 : vector<2x16xf32> to vector<2x16x1xf32>
    %c2_76 = arith.constant 2 : index
    %c0_77 = arith.constant 0 : index
    %136 = vector.load %arg12[%c2_76, %c0_77] : memref<3x128xf32, #tpu.memory_space<vmem>>, vector<1x128xf32>
    %137 = vector.shape_cast %136 : vector<1x128xf32> to vector<128xf32>
    %138 = vector.shape_cast %137 : vector<128xf32> to vector<1x1x128xf32>
    %139 = vector.broadcast %135 : vector<2x16x1xf32> to vector<2x16x128xf32>
    %140 = vector.broadcast %138 : vector<1x1x128xf32> to vector<2x16x128xf32>
    %141 = arith.mulf %139, %140 : vector<2x16x128xf32>
    %142 = arith.addf %134, %141 : vector<2x16x128xf32>
    %143 = vector.shape_cast %113 : vector<2x128xf32> to vector<2x1x128xf32>
    %c0_78 = arith.constant 0 : index
    %c0_79 = arith.constant 0 : index
    %c0_80 = arith.constant 0 : index
    %144 = vector.load %arg5[%c0_78, %c0_79, %c0_80] : memref<2x16x128xf32, #tpu.memory_space<vmem>>, vector<2x16x128xf32>
    %145 = vector.broadcast %143 : vector<2x1x128xf32> to vector<2x16x128xf32>
    %146 = arith.addf %145, %144 : vector<2x16x128xf32>
    %147 = arith.addf %146, %142 : vector<2x16x128xf32>
    %c0_81 = arith.constant 0 : index
    %c0_82 = arith.constant 0 : index
    %148 = vector.load %arg14[%c0_81, %c0_82] : memref<1x128xf32, #tpu.memory_space<vmem>>, vector<1x128xf32>
    %149 = vector.shape_cast %148 : vector<1x128xf32> to vector<1x1x128xf32>
    %150 = vector.broadcast %149 : vector<1x1x128xf32> to vector<2x16x128xf32>
    %151 = arith.addf %147, %150 : vector<2x16x128xf32>
    %152 = math.tanh %151 : vector<2x16x128xf32>
    %c0_83 = arith.constant 0 : index
    %c0_84 = arith.constant 0 : index
    %153 = vector.load %arg13[%c0_83, %c0_84] : memref<1x128xf32, #tpu.memory_space<vmem>>, vector<1x128xf32>
    %154 = vector.shape_cast %153 : vector<1x128xf32> to vector<1x1x128xf32>
    %155 = vector.broadcast %154 : vector<1x1x128xf32> to vector<2x16x128xf32>
    %156 = arith.mulf %152, %155 : vector<2x16x128xf32>
    %cst_85 = arith.constant dense<0.000000e+00> : vector<2x16xf32>
    %157 = vector.multi_reduction <add>, %156, %cst_85 [2] : vector<2x16x128xf32> to vector<2x16xf32>
    %c0_86 = arith.constant 0 : index
    %c0_87 = arith.constant 0 : index
    %158 = vector.load %arg7[%c0_86, %c0_87] : memref<2x16xf32, #tpu.memory_space<vmem>>, vector<2x16xf32>
    %cst_88 = arith.constant 5.000000e-01 : f32
    %159 = vector.broadcast %cst_88 : f32 to vector<2x16xf32>
    %160 = arith.cmpf ogt, %158, %159 : vector<2x16xf32>
    %cst_89 = arith.constant -1.000000e+09 : f32
    %161 = vector.broadcast %cst_89 : f32 to vector<2x16xf32>
    %162 = arith.select %160, %157, %161 : vector<2x16xi1>, vector<2x16xf32>
    %cst_90 = arith.constant dense<0xFF800000> : vector<2xf32>
    %163 = vector.multi_reduction <maximumf>, %162, %cst_90 [1] : vector<2x16xf32> to vector<2xf32>
    %164 = vector.shape_cast %163 : vector<2xf32> to vector<2x1xf32>
    %165 = vector.broadcast %164 : vector<2x1xf32> to vector<2x16xf32>
    %166 = arith.subf %162, %165 : vector<2x16xf32>
    %167 = math.exp %166 : vector<2x16xf32>
    %cst_91 = arith.constant dense<0.000000e+00> : vector<2xf32>
    %168 = vector.multi_reduction <add>, %167, %cst_91 [1] : vector<2x16xf32> to vector<2xf32>
    %169 = vector.shape_cast %168 : vector<2xf32> to vector<2x1xf32>
    %cst_92 = arith.constant 9.99999997E-7 : f32
    %170 = vector.broadcast %cst_92 : f32 to vector<2x1xf32>
    %171 = arith.maximumf %169, %170 : vector<2x1xf32>
    %172 = vector.broadcast %171 : vector<2x1xf32> to vector<2x16xf32>
    %173 = arith.divf %167, %172 : vector<2x16xf32>
    %174 = vector.shape_cast %173 : vector<2x16xf32> to vector<2x1x16xf32>
    %175 = arith.truncf %174 : vector<2x1x16xf32> to vector<2x1x16xbf16>
    %c0_93 = arith.constant 0 : index
    %c0_94 = arith.constant 0 : index
    %c0_95 = arith.constant 0 : index
    %176 = vector.load %arg6[%c0_93, %c0_94, %c0_95] : memref<2x16x128xbf16, #tpu.memory_space<vmem>>, vector<2x16x128xbf16>
    "tpu.trace_start"() <{level = 10 : i32, message = "bqt,btd->bqd"}> : () -> ()
    %cst_96 = arith.constant dense<0.000000e+00> : vector<2x1x128xf32>
    %177 = tpu.matmul %175, %176, %cst_96 {dimension_numbers = #tpu.dot_dimension_numbers<[2], [1], [1], [2], [0, 0, 0, 1, 1, 2], [0], [0]>} : vector<2x1x16xbf16>, vector<2x16x128xbf16>, vector<2x1x128xf32> -> vector<2x1x128xf32>
    "tpu.trace_stop"() : () -> ()
    %178 = vector.shape_cast %177 : vector<2x1x128xf32> to vector<2x128xf32>
    %c0_97 = arith.constant 0 : index
    %c0_98 = arith.constant 0 : index
    %179 = vector.load %arg17[%c0_97, %c0_98] : memref<2x128xf32, #tpu.memory_space<vmem>>, vector<2x128xf32>
    tpu.vector_store %arg17[%c0_97, %c0_98], %178 {strides = array<i32>} : memref<2x128xf32, #tpu.memory_space<vmem>>, vector<2x128xf32>,
    %c0_99 = arith.constant 0 : index
    %c0_100 = arith.constant 0 : index
    %180 = vector.load %arg18[%c0_99, %c0_100] : memref<2x16xf32, #tpu.memory_space<vmem>>, vector<2x16xf32>
    tpu.vector_store %arg18[%c0_99, %c0_100], %173 {strides = array<i32>} : memref<2x16xf32, #tpu.memory_space<vmem>>, vector<2x16xf32>,
    %181 = arith.addf %178, %104 : vector<2x128xf32>
    %c0_101 = arith.constant 0 : index
    %c0_102 = arith.constant 0 : index
    %182 = vector.load %arg19[%c0_101, %c0_102] : memref<2x128xf32, #tpu.memory_space<vmem>>, vector<2x128xf32>
    tpu.vector_store %arg19[%c0_101, %c0_102], %181 {strides = array<i32>} : memref<2x128xf32, #tpu.memory_space<vmem>>, vector<2x128xf32>,
    return
  }
}

</mosaic_0001>

<llo_original>
// kernel: decoder_step.3
$region0: #{decoder_step.3}
  #allocation0 [shape = 'u32[]', space=smem, size = 0x4, offset = 0x4, fixed_abs, tag = 'smem constant byte address 0x4 - core index']
  #allocation1 [shape = 'u32[144,128]{1,0:T(1,128)}', space=vmem, size = 0x12000, scoped, tag = 'internal scratch']
  %s0 = inlined_call_operand.vmem [shape: f32[2,128], index: 0, kind: input, shape index: {}]
  %s1 = inlined_call_operand.vmem [shape: bf16[128,256], index: 1, kind: input, shape index: {}]
  %s2 = inlined_call_operand.hbm [shape: f32[2,256], index: 2, kind: output, shape index: {}]
  %s3 = sld [smem:[#allocation0]]
  $region82: #{decoder_step.3} parent=0
    _
  %s5 = ssub.s32 1, %s3
  %s6 = scalar_select 0, %s5, %s3
  $region1: #{decoder_step.3} parent=0
    #allocation2 [shape = 'u8[65536]{0}', space=vmem, size = 0x10000, scoped, tag = 'input window, operand 1']
    #allocation3 [shape = 'u8[2048]{0}', space=vmem, size = 0x800, scoped, tag = 'output window, operand 0']
    #allocation4 [shape = 's32[2]{0}', space=sflag, size = 0x8, scoped, tag = 'scoped memory for decoder_step.3']
    %7 = vsyncpa [#allocation4], 0
    %s8 = scalar_lea.sflag [#allocation4], 1
    %9 = vsyncpa %s8, 0
    loop: start=0, step=1, limit=4
    $region2: #{decoder_step.3} parent=1 // loop_pre_header
      _
    $region3: #{decoder_step.3} parent=1 // loop_header
      %s11 = sphi 0, %s15
      %p12 = scmp.ge.s32.totalorder %s11, 4
      %s19 = sphi 0, %s19
      %s21 = sphi 0, %s19
      %s22 = sphi 0, %s21
      %s36 = sphi 0, %s22
      %s42 = sphi 0, %s44
      %s45 = sphi 0, %s42
      %s46 = sphi 0, %s45
      %s62 = sphi 0, %s46
      %s68 = sphi 0, %s70
      %s71 = sphi 0, %s68
      %s72 = sphi 0, %s71
      %s88 = sphi 0, %s72
    $region4: #{decoder_step.3} parent=1 // loop_header_branch
      %14 = sbr.rel (%p12) target = $region8
    $region5: #{decoder_step.3} parent=1 // loop_body
      %s16 = ssub.s32 %s11, 1
      %s17 = ssub.s32 %s11, 2
      %s18 = sadd.s32 %s11, 1
      %s20 = sadd.s32 %s19, 1
      %p23 = scmp.eq.s32.totalorder %s11, 1
      %p24 = scmp.ne.s32.totalorder %s19, %s21
      %p25 = scmp.eq.s32.totalorder %s11, 0
      %p26 = por %p24, %p25
      %p27 = scmp.ne.s32.totalorder %s19, %s21
      %p28 = scmp.eq.s32.totalorder %s16, 1
      %p29 = por %p27, %p28
      %p30 = scmp.ne.s32.totalorder %s21, %s22
      %p31 = scmp.eq.s32.totalorder %s16, 0
      %p32 = por %p30, %p31
      %p33 = scmp.ne.s32.totalorder %s21, %s22
      %p34 = scmp.eq.s32.totalorder %s17, 1
      %p35 = por %p33, %p34
      %p37 = scmp.ne.s32.totalorder %s22, %s36
      %p38 = scmp.eq.s32.totalorder %s17, 0
      %p39 = por %p37, %p38
      %s40 = ssub.s32 %s11, %s18
      %p41 = scmp.eq.s32.totalorder %s40, 0
      %s43 = sadd.s32 %s42, 1
      %s44 = scalar_select %p41, %s42, %s43
      %p47 = pneg %p41
      %p48 = scmp.eq.s32.totalorder %s11, 1
      %p49 = por %p47, %p48
      %p50 = scmp.ne.s32.totalorder %s42, %s45
      %p51 = scmp.eq.s32.totalorder %s11, 0
      %p52 = por %p50, %p51
      %p53 = scmp.ne.s32.totalorder %s42, %s45
      %p54 = scmp.eq.s32.totalorder %s16, 1
      %p55 = por %p53, %p54
      %p56 = scmp.ne.s32.totalorder %s45, %s46
      %p57 = scmp.eq.s32.totalorder %s16, 0
      %p58 = por %p56, %p57
      %p59 = scmp.ne.s32.totalorder %s45, %s46
      %p60 = scmp.eq.s32.totalorder %s17, 1
      %p61 = por %p59, %p60
      %p63 = scmp.ne.s32.totalorder %s46, %s62
      %p64 = scmp.eq.s32.totalorder %s17, 0
      %p65 = por %p63, %p64
      %s66 = ssub.s32 %s11, %s18
      %p67 = scmp.eq.s32.totalorder %s66, 0
      %s69 = sadd.s32 %s68, 1
      %s70 = scalar_select %p67, %s68, %s69
      %p73 = pneg %p67
      %p74 = scmp.eq.s32.totalorder %s11, 1
      %p75 = por %p73, %p74
      %p76 = scmp.ne.s32.totalorder %s68, %s71
      %p77 = scmp.eq.s32.totalorder %s11, 0
      %p78 = por %p76, %p77
      %p79 = scmp.ne.s32.totalorder %s68, %s71
      %p80 = scmp.eq.s32.totalorder %s16, 1
      %p81 = por %p79, %p80
      %p82 = scmp.ne.s32.totalorder %s71, %s72
      %p83 = scmp.eq.s32.totalorder %s16, 0
      %p84 = por %p82, %p83
      %p85 = scmp.ne.s32.totalorder %s71, %s72
      %p86 = scmp.eq.s32.totalorder %s17, 1
      %p87 = por %p85, %p86
      %p89 = scmp.ne.s32.totalorder %s72, %s88
      %p90 = scmp.eq.s32.totalorder %s17, 0
      %p91 = por %p89, %p90
      %p92 = scmp.le.s32.totalorder 1, %s11
      %p93 = scmp.lt.s32.totalorder %s11, 3
      %p94 = pnand %p92, %p93
      %p95 = pneg %p94
      // Predicated region
      $region9: #{decoder_step.3} parent=5 // pred_check
        _
      $region10: #{decoder_step.3} parent=5 // pred_check_branch
        %97 = sbr.rel (%p94) target = $region12
      $region11: #{decoder_step.3} parent=5 // pred_region
        %s98 = ssub.s32 %s11, 1
        // Predicated region
        $region13: #{decoder_step.3} parent=11 // pred_check
          %p99 = pneg %p32
        $region14: #{decoder_step.3} parent=11 // pred_check_branch
          %101 = sbr.rel (%p99) target = $region16
        $region15: #{decoder_step.3} parent=11 // pred_region
          _
        $region16: #{decoder_step.3} parent=11 // pred_fallthru
          _
      $region12: #{decoder_step.3} parent=5 // pred_fallthru
        _
      %p102 = scmp.lt.s32.totalorder %s11, 2
      // Predicated region
      $region17: #{decoder_step.3} parent=5 // pred_check
        %p103 = pneg %p102
      $region18: #{decoder_step.3} parent=5 // pred_check_branch
        %105 = sbr.rel (%p103) target = $region20
      $region19: #{decoder_step.3} parent=5 // pred_region
        // Predicated region
        $region21: #{decoder_step.3} parent=19 // pred_check
          %p106 = pneg %p52
        $region22: #{decoder_step.3} parent=19 // pred_check_branch
          %108 = sbr.rel (%p106) target = $region24
        $region23: #{decoder_step.3} parent=19 // pred_region
          %s109 = sand.u32 %s42, 1
          %s110 = sand.u32 %s42, 1
          %s111 = smul.addr %s110, 64
          %s112 = scalar_lea.vmem [#allocation2], %s111
          %s113 = smul.addr %s11, 4
          %s114 = scalar_lea.vmem %s1, %s113
          // Predicated region
          $region25: #{decoder_step.3} parent=23 // pred_check
            _
          $region26: #{decoder_step.3} parent=23 // pred_check_branch
            %116 = sbr.rel (0) target = $region28
          $region27: #{decoder_step.3} parent=23 // pred_region
            // Predicated region
            $region29: #{decoder_step.3} parent=27 // pred_check
              _
            $region30: #{decoder_step.3} parent=27 // pred_check_branch
              %118 = sbr.rel target = $region32
            $region31: #{decoder_step.3} parent=27 // pred_region
              // Predicated region
              $region44: #{decoder_step.3} parent=31 // pred_check
                _
              $region45: #{decoder_step.3} parent=31 // pred_check_branch
                %163 = sbr.rel (0) target = $region47
              $region46: #{decoder_step.3} parent=31 // pred_region
                loop: start=0, step=1, limit=1
                $region48: #{decoder_step.3} parent=46 // loop_pre_header
                  _
                $region49: #{decoder_step.3} parent=46 // loop_header
                  %s165 = sphi 0, %s169
                  %p166 = scmp.ge.s32.totalorder %s165, 1
                  %s170 = sphi %s114, %s114
                  %s171 = sphi %s112, %s112
                $region50: #{decoder_step.3} parent=46 // loop_header_branch
                  %168 = sbr.rel (%p166) target = $region54
                $region51: #{decoder_step.3} parent=46 // loop_body
                  _
                $region52: #{decoder_step.3} parent=46 // loop_footer
                  %s169 = sadd.s32 1, %s165
                $region53: #{decoder_step.3} parent=46 // loop_footer_branch
                  %164 = sbr.rel target = $region49
                $region54: #{decoder_step.3} parent=46 // loop_exit
                  _
                loop: start=0, step=1, limit=1
                $region55: #{decoder_step.3} parent=46 // loop_pre_header
                  _
                $region56: #{decoder_step.3} parent=46 // loop_header
                  %s174 = sphi 0, %s178
                  %p175 = scmp.ge.s32.totalorder %s174, 1
                  %s179 = sphi %s114, %s114
                  %s180 = sphi %s112, %s112
                $region57: #{decoder_step.3} parent=46 // loop_header_branch
                  %177 = sbr.rel (%p175) target = $region61
                $region58: #{decoder_step.3} parent=46 // loop_body
                  %v181 = vld [vmem:[%s179] sm:$0xf]
                  %182 = vst [vmem:[%s180] sm:$0xf] %v181
                  %v183 = vld [vmem:[%s179 + $0x8] sm:$0xf]
                  %184 = vst [vmem:[%s180 + $0x4] sm:$0xf] %v183
                  %v185 = vld [vmem:[%s179 + $0x10] sm:$0xf]
                  %186 = vst [vmem:[%s180 + $0x8] sm:$0xf] %v185
                  %v187 = vld [vmem:[%s179 + $0x18] sm:$0xf]
                  %188 = vst [vmem:[%s180 + $0xc] sm:$0xf] %v187
                  %v189 = vld [vmem:[%s179 + $0x20] sm:$0xf]
                  %190 = vst [vmem:[%s180 + $0x10] sm:$0xf] %v189
                  %v191 = vld [vmem:[%s179 + $0x28] sm:$0xf]
                  %192 = vst [vmem:[%s180 + $0x14] sm:$0xf] %v191
                  %v193 = vld [vmem:[%s179 + $0x30] sm:$0xf]
                  %194 = vst [vmem:[%s180 + $0x18] sm:$0xf] %v193
                  %v195 = vld [vmem:[%s179 + $0x38] sm:$0xf]
                  %196 = vst [vmem:[%s180 + $0x1c] sm:$0xf] %v195
                  %v197 = vld [vmem:[%s179 + $0x40] sm:$0xf]
                  %198 = vst [vmem:[%s180 + $0x20] sm:$0xf] %v197
                  %v199 = vld [vmem:[%s179 + $0x48] sm:$0xf]
                  %200 = vst [vmem:[%s180 + $0x24] sm:$0xf] %v199
                  %v201 = vld [vmem:[%s179 + $0x50] sm:$0xf]
                  %202 = vst [vmem:[%s180 + $0x28] sm:$0xf] %v201
                  %v203 = vld [vmem:[%s179 + $0x58] sm:$0xf]
                  %204 = vst [vmem:[%s180 + $0x2c] sm:$0xf] %v203
                  %v205 = vld [vmem:[%s179 + $0x60] sm:$0xf]
                  %206 = vst [vmem:[%s180 + $0x30] sm:$0xf] %v205
                  %v207 = vld [vmem:[%s179 + $0x68] sm:$0xf]
                  %208 = vst [vmem:[%s180 + $0x34] sm:$0xf] %v207
                  %v209 = vld [vmem:[%s179 + $0x70] sm:$0xf]
                  %210 = vst [vmem:[%s180 + $0x38] sm:$0xf] %v209
                  %v211 = vld [vmem:[%s179 + $0x78] sm:$0xf]
                  %212 = vst [vmem:[%s180 + $0x3c] sm:$0xf] %v211
                $region59: #{decoder_step.3} parent=46 // loop_footer
                  %s178 = sadd.s32 1, %s174
                $region60: #{decoder_step.3} parent=46 // loop_footer_branch
                  %173 = sbr.rel target = $region56
                $region61: #{decoder_step.3} parent=46 // loop_exit
                  _
              $region47: #{decoder_step.3} parent=31 // pred_fallthru
                _
            $region32: #{decoder_step.3} parent=27 // pred_fallthru
              _
            // Predicated region
            $region33: #{decoder_step.3} parent=27 // pred_check
              _
            $region34: #{decoder_step.3} parent=27 // pred_check_branch
              %120 = sbr.rel (0) target = $region36
            $region35: #{decoder_step.3} parent=27 // pred_region
              loop: start=0, step=1, limit=1
              $region37: #{decoder_step.3} parent=35 // loop_pre_header
                _
              $region38: #{decoder_step.3} parent=35 // loop_header
                %s123 = sphi 0, %s127
                %p124 = scmp.ge.s32.totalorder %s123, 1
                %s128 = sphi %s114, %s114
                %s129 = sphi %s112, %s112
              $region39: #{decoder_step.3} parent=35 // loop_header_branch
                %126 = sbr.rel (%p124) target = $region43
              $region40: #{decoder_step.3} parent=35 // loop_body
                %v130 = vld [vmem:[%s128] sm:$0xf]
                %131 = vst [vmem:[%s129] sm:$0xf] %v130
                %v132 = vld [vmem:[%s128 + $0x8] sm:$0xf]
                %133 = vst [vmem:[%s129 + $0x4] sm:$0xf] %v132
                %v134 = vld [vmem:[%s128 + $0x10] sm:$0xf]
                %135 = vst [vmem:[%s129 + $0x8] sm:$0xf] %v134
                %v136 = vld [vmem:[%s128 + $0x18] sm:$0xf]
                %137 = vst [vmem:[%s129 + $0xc] sm:$0xf] %v136
                %v138 = vld [vmem:[%s128 + $0x20] sm:$0xf]
                %139 = vst [vmem:[%s129 + $0x10] sm:$0xf] %v138
                %v140 = vld [vmem:[%s128 + $0x28] sm:$0xf]
                %141 = vst [vmem:[%s129 + $0x14] sm:$0xf] %v140
                %v142 = vld [vmem:[%s128 + $0x30] sm:$0xf]
                %143 = vst [vmem:[%s129 + $0x18] sm:$0xf] %v142
                %v144 = vld [vmem:[%s128 + $0x38] sm:$0xf]
                %145 = vst [vmem:[%s129 + $0x1c] sm:$0xf] %v144
                %v146 = vld [vmem:[%s128 + $0x40] sm:$0xf]
                %147 = vst [vmem:[%s129 + $0x20] sm:$0xf] %v146
                %v148 = vld [vmem:[%s128 + $0x48] sm:$0xf]
                %149 = vst [vmem:[%s129 + $0x24] sm:$0xf] %v148
                %v150 = vld [vmem:[%s128 + $0x50] sm:$0xf]
                %151 = vst [vmem:[%s129 + $0x28] sm:$0xf] %v150
                %v152 = vld [vmem:[%s128 + $0x58] sm:$0xf]
                %153 = vst [vmem:[%s129 + $0x2c] sm:$0xf] %v152
                %v154 = vld [vmem:[%s128 + $0x60] sm:$0xf]
                %155 = vst [vmem:[%s129 + $0x30] sm:$0xf] %v154
                %v156 = vld [vmem:[%s128 + $0x68] sm:$0xf]
                %157 = vst [vmem:[%s129 + $0x34] sm:$0xf] %v156
                %v158 = vld [vmem:[%s128 + $0x70] sm:$0xf]
                %159 = vst [vmem:[%s129 + $0x38] sm:$0xf] %v158
                %v160 = vld [vmem:[%s128 + $0x78] sm:$0xf]
                %161 = vst [vmem:[%s129 + $0x3c] sm:$0xf] %v160
              $region41: #{decoder_step.3} parent=35 // loop_footer
                %s127 = sadd.s32 1, %s123
              $region42: #{decoder_step.3} parent=35 // loop_footer_branch
                %122 = sbr.rel target = $region38
              $region43: #{decoder_step.3} parent=35 // loop_exit
                _
            $region36: #{decoder_step.3} parent=27 // pred_fallthru
              _
          $region28: #{decoder_step.3} parent=23 // pred_fallthru
            _
          %213 = vnop
        $region24: #{decoder_step.3} parent=19 // pred_fallthru
          _
      $region20: #{decoder_step.3} parent=5 // pred_fallthru
        _
      %p214 = scmp.le.s32.totalorder 1, %s11
      %p215 = scmp.lt.s32.totalorder %s11, 3
      %p216 = pnand %p214, %p215
      %p217 = pneg %p216
      // Predicated region
      $region62: #{decoder_step.3} parent=5 // pred_check
        _
      $region63: #{decoder_step.3} parent=5 // pred_check_branch
        %219 = sbr.rel (%p216) target = $region65
      $region64: #{decoder_step.3} parent=5 // pred_region
        %s220 = ssub.s32 %s11, 1
        %s221 = sand.u32 %s45, 1
        %s222 = sand.u32 %s45, 1
        %s223 = smul.addr %s222, 64
        %s224 = scalar_lea.vmem [#allocation2], %s223
        // Predicated region
        $region66: #{decoder_step.3} parent=64 // pred_check
          %p225 = pneg %p58
        $region67: #{decoder_step.3} parent=64 // pred_check_branch
          %227 = sbr.rel (%p225) target = $region69
        $region68: #{decoder_step.3} parent=64 // pred_region
          _
        $region69: #{decoder_step.3} parent=64 // pred_fallthru
          _
        %p228 = pneg %p32
        %p229 = pneg %p29
        %s230 = sand.u32 %s45, 1
        %s231 = sand.u32 %s45, 1
        %s232 = smul.addr %s231, 64
        %s233 = scalar_lea.vmem [#allocation2], %s232
        %p234 = pneg %p58
        %p235 = pneg %p55
        %p236 = pneg %p84
        %p237 = pneg %p81
        %s238 = sand.u32 %s71, 1
        %s239 = scalar_lea.sflag [#allocation4], %s238
        %s240 = sand.u32 %s71, 1
        %s241 = smul.addr %s240, 2
        %s242 = scalar_lea.vmem [#allocation3], %s241
        %v244 = vld [vmem:[%s0] sm:$0x3]
        %v245 = vpack.c.bf16 %v244, %v244
        %v246 = vld [vmem:[%s224] sm:$0xf]
        %v247 = vld [vmem:[%s224 + $0x4] sm:$0xf]
        %v248 = vld [vmem:[%s224 + $0x8] sm:$0xf]
        %v249 = vld [vmem:[%s224 + $0xc] sm:$0xf]
        %v250 = vld [vmem:[%s224 + $0x10] sm:$0xf]
        %v251 = vld [vmem:[%s224 + $0x14] sm:$0xf]
        %v252 = vld [vmem:[%s224 + $0x18] sm:$0xf]
        %v253 = vld [vmem:[%s224 + $0x1c] sm:$0xf]
        %v254 = vld [vmem:[%s224 + $0x20] sm:$0xf]
        %v255 = vld [vmem:[%s224 + $0x24] sm:$0xf]
        %v256 = vld [vmem:[%s224 + $0x28] sm:$0xf]
        %v257 = vld [vmem:[%s224 + $0x2c] sm:$0xf]
        %v258 = vld [vmem:[%s224 + $0x30] sm:$0xf]
        %v259 = vld [vmem:[%s224 + $0x34] sm:$0xf]
        %v260 = vld [vmem:[%s224 + $0x38] sm:$0xf]
        %v261 = vld [vmem:[%s224 + $0x3c] sm:$0xf]
        %v278 = vunpack.c.l.b16 %v246
        %v279 = vunpack.c.l.b16 %v247
        %v280 = vunpack.c.l.b16 %v248
        %v281 = vunpack.c.l.b16 %v249
        %v282 = vunpack.c.l.b16 %v250
        %v283 = vunpack.c.l.b16 %v251
        %v284 = vunpack.c.l.b16 %v252
        %v285 = vunpack.c.l.b16 %v253
        %v286 = vunpack.c.l.b16 %v254
        %v287 = vunpack.c.l.b16 %v255
        %v288 = vunpack.c.l.b16 %v256
        %v289 = vunpack.c.l.b16 %v257
        %v290 = vunpack.c.l.b16 %v258
        %v291 = vunpack.c.l.b16 %v259
        %v292 = vunpack.c.l.b16 %v260
        %v293 = vunpack.c.l.b16 %v261
        %v294 = vpack.c.b16 %v279, %v278
        %v295 = vpack.c.b16 %v281, %v280
        %v296 = vpack.c.b16 %v283, %v282
        %v297 = vpack.c.b16 %v285, %v284
        %v298 = vpack.c.b16 %v287, %v286
        %v299 = vpack.c.b16 %v289, %v288
        %v300 = vpack.c.b16 %v291, %v290
        %v301 = vpack.c.b16 %v293, %v292
        %310 = vmatprep.subr.bf16.mxu0 0
        %311 = vmatpush1.bf16.msra.mxu0 %v294
        %312 = vmatprep.subr.bf16.mxu0 0
        %313 = vmatpush1.bf16.msra.mxu0 %v295
        %314 = vmatprep.subr.bf16.mxu0 0
        %315 = vmatpush1.bf16.msra.mxu0 %v296
        %316 = vmatprep.subr.bf16.mxu0 0
        %317 = vmatpush1.bf16.msra.mxu0 %v297
        %318 = vmatprep.subr.bf16.mxu0 0
        %319 = vmatpush1.bf16.msra.mxu0 %v298
        %320 = vmatprep.subr.bf16.mxu0 0
        %321 = vmatpush1.bf16.msra.mxu0 %v299
        %322 = vmatprep.subr.bf16.mxu0 0
        %323 = vmatpush1.bf16.msra.mxu0 %v300
        %324 = vmatprep.subr.bf16.mxu0 0
        %325 = vmatpush1.bf16.msra.mxu0 %v301
        %326 = vmatprep.subr.bf16.mxu0 0
        %327 = vmatpush1.bf16.msra.mxu0 0
        %328 = vmatprep.subr.bf16.mxu0 0
        %329 = vmatpush1.bf16.msra.mxu0 0
        %330 = vmatprep.subr.bf16.mxu0 0
        %331 = vmatpush1.bf16.msra.mxu0 0
        %332 = vmatprep.subr.bf16.mxu0 0
        %333 = vmatpush1.bf16.msra.mxu0 0
        %334 = vmatprep.subr.bf16.mxu0 0
        %335 = vmatpush1.bf16.msra.mxu0 0
        %336 = vmatprep.subr.bf16.mxu0 0
        %337 = vmatpush1.bf16.msra.mxu0 0
        %338 = vmatprep.subr.bf16.mxu0 0
        %339 = vmatpush1.bf16.msra.mxu0 0
        %340 = vmatprep.subr.bf16.mxu0 0
        %341 = vmatpush1.bf16.msra.mxu0 0
        %342 = vmatprep.mubr.bf16.mxu0 0
        %343 = vmatmul.mubr.bf16.gmra.mrb[0].mxu0 %v245
        %v344 = vpop.f32.mrb[0].mxu0
        %v345 = vadd.f32 0.0, %v344
        %v346 = vpop.f32.mrb[0].mxu0
        %v347 = vpop.f32.mrb[0].mxu0
        %v348 = vpop.f32.mrb[0].mxu0
        %349 = vdwg.mxu0
        %350 = vst [vmem:[%s242] sm:$0x3] %v345
        %s351 = sand.u32 %s71, 1
        %s352 = scalar_lea.sflag [#allocation4], %s351
        %s353 = sand.u32 %s71, 1
        %s354 = smul.addr %s353, 2
        %s355 = scalar_lea.vmem [#allocation3], %s354
        // Predicated region
        $region70: #{decoder_step.3} parent=64 // pred_check
          %p356 = pneg %p81
        $region71: #{decoder_step.3} parent=64 // pred_check_branch
          %358 = sbr.rel (%p356) target = $region73
        $region72: #{decoder_step.3} parent=64 // pred_region
          %s360 = ssub.s32 32, 32
          %361 = vsyncadd %s352, %s360
          %s362 = smul.addr %s16, 32
          %s363 = scalar_lea.hbm %s2, %s362
          %s365 = sshll.u32 %s355, 4
          %s366 = int_to_ptr.vmem [resolvable:$true] %s365
          %368 = dma.vmem_to_hbm [thread:$0]  %s366, 32, %s363, %s352
        $region73: #{decoder_step.3} parent=64 // pred_fallthru
          _
      $region65: #{decoder_step.3} parent=5 // pred_fallthru
        _
      %p369 = scmp.le.s32.totalorder 2, %s11
      // Predicated region
      $region74: #{decoder_step.3} parent=5 // pred_check
        %p370 = pneg %p369
      $region75: #{decoder_step.3} parent=5 // pred_check_branch
        %372 = sbr.rel (%p370) target = $region77
      $region76: #{decoder_step.3} parent=5 // pred_region
        %s373 = ssub.s32 %s11, 2
        // Predicated region
        $region78: #{decoder_step.3} parent=76 // pred_check
          %p374 = pneg %p87
        $region79: #{decoder_step.3} parent=76 // pred_check_branch
          %376 = sbr.rel (%p374) target = $region81
        $region80: #{decoder_step.3} parent=76 // pred_region
          %s377 = sand.u32 %s72, 1
          %s378 = scalar_lea.sflag [#allocation4], %s377
          %s379 = sand.u32 %s72, 1
          %s380 = smul.addr %s379, 2
          %s381 = scalar_lea.vmem [#allocation3], %s380
          %382 = dma.done %s378, 32
        $region81: #{decoder_step.3} parent=76 // pred_fallthru
          _
      $region77: #{decoder_step.3} parent=5 // pred_fallthru
        _
    $region6: #{decoder_step.3} parent=1 // loop_footer
      %s15 = sadd.s32 1, %s11
    $region7: #{decoder_step.3} parent=1 // loop_footer_branch
      %10 = sbr.rel target = $region3
    $region8: #{decoder_step.3} parent=1 // loop_exit
      _
    %383 = vsyncpa [#allocation4], 1
    %s384 = scalar_lea.sflag [#allocation4], 1
    %385 = vsyncpa %s384, 1

// kernel: decoder_step.2
$region0: #{decoder_step.2}
  #allocation0 [shape = 'u32[]', space=smem, size = 0x4, offset = 0x4, fixed_abs, tag = 'smem constant byte address 0x4 - core index']
  #allocation1 [shape = 'u32[144,128]{1,0:T(1,128)}', space=vmem, size = 0x12000, scoped, tag = 'internal scratch']
  #allocation2 [shape = 'f32[2,128]{1,0:T(2,128)}', space=vmem, size = 0x400, scoped, tag = 'scratch operand']
  #allocation3 [shape = 'f32[2,18]{1,0:T(2,128)}', space=vmem, size = 0x400, scoped, tag = 'scratch operand']
  #allocation4 [shape = 's32[2]{0}', space=sflag, size = 0x8, scoped, tag = 'scratch operand']
  #allocation18 [shape = 's32[]', space=sflag, size = 0x4, offset = 0, fixed_abs, tag = 'sflag constant byte address 0x0 - dummy sync flag']
  #allocation19 [shape = 's32[]', space=sflag, size = 0x4, offset = 0, fixed_abs, tag = 'sflag constant byte address 0x0 - dummy sync flag']
  #allocation20 [shape = 'u32[]', space=smem, size = 0x4, offset = 0x44, fixed_abs, tag = 'smem constant byte address 0x44 - assertion arg 0']
  #allocation21 [shape = 'u32[]', space=smem, size = 0x4, offset = 0x48, fixed_abs, tag = 'smem constant byte address 0x48 - assertion arg 1']
  #allocation22 [shape = 's32[]', space=sflag, size = 0x4, offset = 0, fixed_abs, tag = 'sflag constant byte address 0x0 - dummy sync flag']
  #allocation23 [shape = 's32[]', space=sflag, size = 0x4, offset = 0, fixed_abs, tag = 'sflag constant byte address 0x0 - dummy sync flag']
  %s0 = inlined_call_operand.vmem [shape: s32[2], index: 0, kind: input, shape index: {}]
  %s1 = inlined_call_operand.vmem [shape: f32[2,128], index: 1, kind: input, shape index: {}, may-alias: {1,17}]
  %s2 = inlined_call_operand.vmem [shape: f32[2,2,128], index: 2, kind: input, shape index: {}, may-alias: {2,15}]
  %s3 = inlined_call_operand.vmem [shape: f32[2,2,128], index: 3, kind: input, shape index: {}, may-alias: {3,16}]
  %s4 = inlined_call_operand.vmem [shape: f32[2,16], index: 4, kind: input, shape index: {}, may-alias: {4,18}]
  %s5 = inlined_call_operand.vmem [shape: f32[2,16,128], index: 5, kind: input, shape index: {}]
  %s6 = inlined_call_operand.vmem [shape: bf16[2,16,128], index: 6, kind: input, shape index: {}]
  %s7 = inlined_call_operand.hbm [shape: f32[2,16], index: 7, kind: input, shape index: {}]
  %s8 = inlined_call_operand.hbm [shape: f32[256,128], index: 8, kind: input, shape index: {}]
  %s9 = inlined_call_operand.hbm [shape: bf16[2,256,512], index: 9, kind: input, shape index: {}]
  %s10 = inlined_call_operand.hbm [shape: f32[2,512], index: 10, kind: input, shape index: {}]
  %s11 = inlined_call_operand.hbm [shape: bf16[128,128], index: 11, kind: input, shape index: {}]
  %s12 = inlined_call_operand.hbm [shape: f32[3,128], index: 12, kind: input, shape index: {}]
  %s13 = inlined_call_operand.hbm [shape: f32[1,128], index: 13, kind: input, shape index: {}]
  %s14 = inlined_call_operand.hbm [shape: f32[1,128], index: 14, kind: input, shape index: {}]
  %s15 = inlined_call_operand.vmem [shape: f32[2,2,128], index: 15, kind: output, shape index: {0}, may-alias: {2,15}]
  %s16 = inlined_call_operand.vmem [shape: f32[2,2,128], index: 16, kind: output, shape index: {1}, may-alias: {3,16}]
  %s17 = inlined_call_operand.vmem [shape: f32[2,128], index: 17, kind: output, shape index: {2}, may-alias: {1,17}]
  %s18 = inlined_call_operand.vmem [shape: f32[2,16], index: 18, kind: output, shape index: {3}, may-alias: {4,18}]
  %s19 = inlined_call_operand.vmem [shape: f32[2,128], index: 19, kind: output, shape index: {4}]
  %20 = xla_tuple %s15, %s16, %s17, %s18, %s19
  %s21 = sld [smem:[#allocation0]]
  $region138: #{decoder_step.2} parent=0
    _
  %s23 = ssub.s32 1, %s21
  %s24 = scalar_select 0, %s23, %s21
  $region1: #{decoder_step.2} parent=0
    #allocation5 [shape = 'u8[512]{0}', space=smem, size = 0x200, scoped, tag = 'input window, operand 0, single buffered']
    #allocation6 [shape = 's32[1]{0}', space=sflag, size = 0x4, scoped, tag = 'scoped memory for decoder_step.2']
    #allocation7 [shape = 's32[1]{0}', space=sflag, size = 0x4, scoped, tag = 'scoped memory for decoder_step.2']
    #allocation8 [shape = 'u8[1024]{0}', space=vmem, size = 0x400, scoped, tag = 'input window, operand 7, single buffered']
    #allocation9 [shape = 'u8[524288]{0}', space=vmem, size = 0x80000, scoped, tag = 'input window, operand 9, single buffered']
    #allocation10 [shape = 's32[1]{0}', space=sflag, size = 0x4, scoped, tag = 'scoped memory for decoder_step.2']
    #allocation11 [shape = 'u8[4096]{0}', space=vmem, size = 0x1000, scoped, tag = 'input window, operand 10, single buffered']
    #allocation12 [shape = 'u8[32768]{0}', space=vmem, size = 0x8000, scoped, tag = 'input window, operand 11, single buffered']
    #allocation13 [shape = 's32[1]{0}', space=sflag, size = 0x4, scoped, tag = 'scoped memory for decoder_step.2']
    #allocation14 [shape = 'u8[2048]{0}', space=vmem, size = 0x800, scoped, tag = 'input window, operand 12, single buffered']
    #allocation15 [shape = 'u8[512]{0}', space=vmem, size = 0x400, scoped, tag = 'input window, operand 13, single buffered']
    #allocation16 [shape = 's32[1]{0}', space=sflag, size = 0x4, scoped, tag = 'scoped memory for decoder_step.2']
    #allocation17 [shape = 'u8[512]{0}', space=vmem, size = 0x400, scoped, tag = 'input window, operand 14, single buffered']
    %25 = vsyncpa [#allocation7], 0
    %26 = vsyncpa [#allocation6], 0
    %27 = vsyncpa [#allocation10], 0
    %28 = vsyncpa [#allocation13], 0
    %29 = vsyncpa [#allocation16], 0
    // Predicated region
    $region2: #{decoder_step.2} parent=1 // pred_check
      _
    $region3: #{decoder_step.2} parent=1 // pred_check_branch
      %31 = sbr.rel (0) target = $region5
    $region4: #{decoder_step.2} parent=1 // pred_region
      %s33 = ssub.s32 16, 16
      %34 = vsyncadd [#allocation7], %s33
      %s36 = sshll.u32 %s0, 4
      %s37 = int_to_ptr.vmem [resolvable:$true] %s36
      %39 = dma.vmem_to_smem %s37, 16, [#allocation5], [#allocation7]
    $region5: #{decoder_step.2} parent=1 // pred_fallthru
      _
    // Predicated region
    $region6: #{decoder_step.2} parent=1 // pred_check
      _
    $region7: #{decoder_step.2} parent=1 // pred_check_branch
      %41 = sbr.rel (0) target = $region9
    $region8: #{decoder_step.2} parent=1 // pred_region
      _
    $region9: #{decoder_step.2} parent=1 // pred_fallthru
      _
    // Predicated region
    $region10: #{decoder_step.2} parent=1 // pred_check
      _
    $region11: #{decoder_step.2} parent=1 // pred_check_branch
      %43 = sbr.rel (0) target = $region13
    $region12: #{decoder_step.2} parent=1 // pred_region
      _
    $region13: #{decoder_step.2} parent=1 // pred_fallthru
      _
    // Predicated region
    $region14: #{decoder_step.2} parent=1 // pred_check
      _
    $region15: #{decoder_step.2} parent=1 // pred_check_branch
      %45 = sbr.rel (0) target = $region17
    $region16: #{decoder_step.2} parent=1 // pred_region
      _
    $region17: #{decoder_step.2} parent=1 // pred_fallthru
      _
    // Predicated region
    $region18: #{decoder_step.2} parent=1 // pred_check
      _
    $region19: #{decoder_step.2} parent=1 // pred_check_branch
      %47 = sbr.rel (0) target = $region21
    $region20: #{decoder_step.2} parent=1 // pred_region
      _
    $region21: #{decoder_step.2} parent=1 // pred_fallthru
      _
    // Predicated region
    $region22: #{decoder_step.2} parent=1 // pred_check
      _
    $region23: #{decoder_step.2} parent=1 // pred_check_branch
      %49 = sbr.rel (0) target = $region25
    $region24: #{decoder_step.2} parent=1 // pred_region
      _
    $region25: #{decoder_step.2} parent=1 // pred_fallthru
      _
    // Predicated region
    $region26: #{decoder_step.2} parent=1 // pred_check
      _
    $region27: #{decoder_step.2} parent=1 // pred_check_branch
      %51 = sbr.rel (0) target = $region29
    $region28: #{decoder_step.2} parent=1 // pred_region
      _
    $region29: #{decoder_step.2} parent=1 // pred_fallthru
      _
    // Predicated region
    $region30: #{decoder_step.2} parent=1 // pred_check
      _
    $region31: #{decoder_step.2} parent=1 // pred_check_branch
      %53 = sbr.rel (0) target = $region33
    $region32: #{decoder_step.2} parent=1 // pred_region
      %s55 = ssub.s32 32, 32
      %56 = vsyncadd [#allocation6], %s55
      %s58 = sshll.u32 [#allocation8], 4
      %s59 = int_to_ptr.vmem [resolvable:$true] %s58
      %61 = dma.hbm_to_vmem [thread:$0]  %s7, 32, %s59, [#allocation6]
    $region33: #{decoder_step.2} parent=1 // pred_fallthru
      _
    // Predicated region
    $region34: #{decoder_step.2} parent=1 // pred_check
      _
    $region35: #{decoder_step.2} parent=1 // pred_check_branch
      %63 = sbr.rel (0) target = $region37
    $region36: #{decoder_step.2} parent=1 // pred_region
      %s65 = ssub.s32 16384, 16384
      %66 = vsyncadd [#allocation10], %s65
      %s67 = sshll.u32 [#allocation9], 4
      %s68 = int_to_ptr.vmem [resolvable:$true] %s67
      %73 = dma.hbm_to_vmem [thread:$0]  %s9, 16384, %s68, [#allocation10], 256, 256, 16
    $region37: #{decoder_step.2} parent=1 // pred_fallthru
      _
    // Predicated region
    $region38: #{decoder_step.2} parent=1 // pred_check
      _
    $region39: #{decoder_step.2} parent=1 // pred_check_branch
      %75 = sbr.rel (0) target = $region41
    $region40: #{decoder_step.2} parent=1 // pred_region
      %s77 = ssub.s32 128, 128
      %78 = vsyncadd [#allocation10], %s77
      %s80 = sshll.u32 [#allocation11], 4
      %s81 = int_to_ptr.vmem [resolvable:$true] %s80
      %83 = dma.hbm_to_vmem [thread:$0]  %s10, 128, %s81, [#allocation10]
    $region41: #{decoder_step.2} parent=1 // pred_fallthru
      _
    // Predicated region
    $region42: #{decoder_step.2} parent=1 // pred_check
      _
    $region43: #{decoder_step.2} parent=1 // pred_check_branch
      %85 = sbr.rel (0) target = $region45
    $region44: #{decoder_step.2} parent=1 // pred_region
      %s87 = ssub.s32 1024, 1024
      %88 = vsyncadd [#allocation13], %s87
      %s89 = sshll.u32 [#allocation12], 4
      %s90 = int_to_ptr.vmem [resolvable:$true] %s89
      %95 = dma.hbm_to_vmem [thread:$0]  %s11, 1024, %s90, [#allocation13], 64, 64, 4
    $region45: #{decoder_step.2} parent=1 // pred_fallthru
      _
    // Predicated region
    $region46: #{decoder_step.2} parent=1 // pred_check
      _
    $region47: #{decoder_step.2} parent=1 // pred_check_branch
      %97 = sbr.rel (0) target = $region49
    $region48: #{decoder_step.2} parent=1 // pred_region
      %s99 = ssub.s32 64, 64
      %100 = vsyncadd [#allocation13], %s99
      %s102 = sshll.u32 [#allocation14], 4
      %s103 = int_to_ptr.vmem [resolvable:$true] %s102
      %105 = dma.hbm_to_vmem [thread:$0]  %s12, 64, %s103, [#allocation13]
    $region49: #{decoder_step.2} parent=1 // pred_fallthru
      _
    // Predicated region
    $region50: #{decoder_step.2} parent=1 // pred_check
      _
    $region51: #{decoder_step.2} parent=1 // pred_check_branch
      %107 = sbr.rel (0) target = $region53
    $region52: #{decoder_step.2} parent=1 // pred_region
      %s109 = ssub.s32 16, 16
      %110 = vsyncadd [#allocation16], %s109
      %s112 = sshll.u32 [#allocation15], 4
      %s113 = int_to_ptr.vmem [resolvable:$true] %s112
      %115 = dma.hbm_to_vmem [thread:$0]  %s13, 16, %s113, [#allocation16]
    $region53: #{decoder_step.2} parent=1 // pred_fallthru
      _
    // Predicated region
    $region54: #{decoder_step.2} parent=1 // pred_check
      _
    $region55: #{decoder_step.2} parent=1 // pred_check_branch
      %117 = sbr.rel (0) target = $region57
    $region56: #{decoder_step.2} parent=1 // pred_region
      %s119 = ssub.s32 16, 16
      %120 = vsyncadd [#allocation16], %s119
      %s122 = sshll.u32 [#allocation17], 4
      %s123 = int_to_ptr.vmem [resolvable:$true] %s122
      %125 = dma.hbm_to_vmem [thread:$0]  %s14, 16, %s123, [#allocation16]
    $region57: #{decoder_step.2} parent=1 // pred_fallthru
      _
    // Predicated region
    $region58: #{decoder_step.2} parent=1 // pred_check
      _
    $region59: #{decoder_step.2} parent=1 // pred_check_branch
      %127 = sbr.rel (0) target = $region61
    $region60: #{decoder_step.2} parent=1 // pred_region
      %128 = dma.done [#allocation7], 16
    $region61: #{decoder_step.2} parent=1 // pred_fallthru
      _
    // Predicated region
    $region62: #{decoder_step.2} parent=1 // pred_check
      _
    $region63: #{decoder_step.2} parent=1 // pred_check_branch
      %130 = sbr.rel (0) target = $region65
    $region64: #{decoder_step.2} parent=1 // pred_region
      %131 = dma.done [#allocation6], 32
    $region65: #{decoder_step.2} parent=1 // pred_fallthru
      _
    // Predicated region
    $region66: #{decoder_step.2} parent=1 // pred_check
      _
    $region67: #{decoder_step.2} parent=1 // pred_check_branch
      %133 = sbr.rel (0) target = $region69
    $region68: #{decoder_step.2} parent=1 // pred_region
      %134 = dma.done [#allocation10], 16384
    $region69: #{decoder_step.2} parent=1 // pred_fallthru
      _
    // Predicated region
    $region70: #{decoder_step.2} parent=1 // pred_check
      _
    $region71: #{decoder_step.2} parent=1 // pred_check_branch
      %136 = sbr.rel (0) target = $region73
    $region72: #{decoder_step.2} parent=1 // pred_region
      %137 = dma.done [#allocation10], 128
    $region73: #{decoder_step.2} parent=1 // pred_fallthru
      _
    // Predicated region
    $region74: #{decoder_step.2} parent=1 // pred_check
      _
    $region75: #{decoder_step.2} parent=1 // pred_check_branch
      %139 = sbr.rel (0) target = $region77
    $region76: #{decoder_step.2} parent=1 // pred_region
      %140 = dma.done [#allocation13], 1024
    $region77: #{decoder_step.2} parent=1 // pred_fallthru
      _
    // Predicated region
    $region78: #{decoder_step.2} parent=1 // pred_check
      _
    $region79: #{decoder_step.2} parent=1 // pred_check_branch
      %142 = sbr.rel (0) target = $region81
    $region80: #{decoder_step.2} parent=1 // pred_region
      %143 = dma.done [#allocation13], 64
    $region81: #{decoder_step.2} parent=1 // pred_fallthru
      _
    // Predicated region
    $region82: #{decoder_step.2} parent=1 // pred_check
      _
    $region83: #{decoder_step.2} parent=1 // pred_check_branch
      %145 = sbr.rel (0) target = $region85
    $region84: #{decoder_step.2} parent=1 // pred_region
      %146 = dma.done [#allocation16], 16
    $region85: #{decoder_step.2} parent=1 // pred_fallthru
      _
    // Predicated region
    $region86: #{decoder_step.2} parent=1 // pred_check
      _
    $region87: #{decoder_step.2} parent=1 // pred_check_branch
      %148 = sbr.rel (0) target = $region89
    $region88: #{decoder_step.2} parent=1 // pred_region
      %149 = dma.done [#allocation16], 16
    $region89: #{decoder_step.2} parent=1 // pred_fallthru
      _
    %150 = sfence
    %s152 = sld [smem:[#allocation5]]
    %s153 = smul.addr %s152, 16
    %s154 = scalar_lea.hbm %s8, %s153
    // Predicated region
    $region90: #{decoder_step.2} parent=1 // pred_check
      _
    $region91: #{decoder_step.2} parent=1 // pred_check_branch
      %156 = sbr.rel target = $region93
    $region92: #{decoder_step.2} parent=1 // pred_region
      %157 = sst [smem:[#allocation20]] [#allocation19]
      %158 = sst [smem:[#allocation21]] [#allocation18]
    $region93: #{decoder_step.2} parent=1 // pred_fallthru
      _
    %160 = shalt.err (0)
    %s162 = sshll.u32 [#allocation2], 4
    %s163 = int_to_ptr.vmem [resolvable:$true] %s162
    %165 = dma.hbm_to_vmem [thread:$0]  %s154, 16, %s163, [#allocation4]
    %s166 = sld [smem:[#allocation5 + $0x1]]
    %s167 = smul.addr %s166, 16
    %s168 = scalar_lea.hbm %s8, %s167
    %s169 = scalar_lea.vmem [#allocation2], 1
    %s170 = scalar_lea.sflag [#allocation4], 1
    // Predicated region
    $region94: #{decoder_step.2} parent=1 // pred_check
      _
    $region95: #{decoder_step.2} parent=1 // pred_check_branch
      %172 = sbr.rel target = $region97
    $region96: #{decoder_step.2} parent=1 // pred_region
      %173 = sst [smem:[#allocation20]] [#allocation23]
      %174 = sst [smem:[#allocation21]] [#allocation22]
    $region97: #{decoder_step.2} parent=1 // pred_fallthru
      _
    %176 = shalt.err (0)
    %s178 = sshll.u32 %s169, 4
    %s179 = int_to_ptr.vmem [resolvable:$true] %s178
    %181 = dma.hbm_to_vmem [thread:$0]  %s168, 16, %s179, %s170
    %s182 = smul.u32 1, 1
    %s183 = sshll.u32 %s182, 4
    %184 = dma.done [#allocation4], %s183
    %s185 = sshll.u32 %s182, 4
    %186 = dma.done %s170, %s185
    %v187 = vld [vmem:[#allocation2] sm:$0x3]
    %v188 = vld [vmem:[%s1] sm:$0x3]
    %v189 = vadd.f32 %v187, %v188
    %v190 = vld [vmem:[%s2] sm:$0x3]
    %v191 = vpack.c.bf16 %v189, %v189
    %v192 = vpack.c.bf16 %v190, %v190
    %v193 = vld [vmem:[#allocation9] sm:$0xff]
    %v194 = vld [vmem:[#allocation9 + $0x8] sm:$0xff]
    %v195 = vld [vmem:[#allocation9 + $0x10] sm:$0xff]
    %v196 = vld [vmem:[#allocation9 + $0x18] sm:$0xff]
    %v197 = vld [vmem:[#allocation9 + $0x20] sm:$0xff]
    %v198 = vld [vmem:[#allocation9 + $0x28] sm:$0xff]
    %v199 = vld [vmem:[#allocation9 + $0x30] sm:$0xff]
    %v200 = vld [vmem:[#allocation9 + $0x38] sm:$0xff]
    %v201 = vld [vmem:[#allocation9 + $0x40] sm:$0xff]
    %v202 = vld [vmem:[#allocation9 + $0x48] sm:$0xff]
    %v203 = vld [vmem:[#allocation9 + $0x50] sm:$0xff]
    %v204 = vld [vmem:[#allocation9 + $0x58] sm:$0xff]
    %v205 = vld [vmem:[#allocation9 + $0x60] sm:$0xff]
    %v206 = vld [vmem:[#allocation9 + $0x68] sm:$0xff]
    %v207 = vld [vmem:[#allocation9 + $0x70] sm:$0xff]
    %v208 = vld [vmem:[#allocation9 + $0x78] sm:$0xff]
    %v209 = vld [vmem:[#allocation9 + $0x80] sm:$0xff]
    %v210 = vld [vmem:[#allocation9 + $0x88] sm:$0xff]
    %v211 = vld [vmem:[#allocation9 + $0x90] sm:$0xff]
    %v212 = vld [vmem:[#allocation9 + $0x98] sm:$0xff]
    %v213 = vld [vmem:[#allocation9 + $0xa0] sm:$0xff]
    %v214 = vld [vmem:[#allocation9 + $0xa8] sm:$0xff]
    %v215 = vld [vmem:[#allocation9 + $0xb0] sm:$0xff]
    %v216 = vld [vmem:[#allocation9 + $0xb8] sm:$0xff]
    %v217 = vld [vmem:[#allocation9 + $0xc0] sm:$0xff]
    %v218 = vld [vmem:[#allocation9 + $0xc8] sm:$0xff]
    %v219 = vld [vmem:[#allocation9 + $0xd0] sm:$0xff]
    %v220 = vld [vmem:[#allocation9 + $0xd8] sm:$0xff]
    %v221 = vld [vmem:[#allocation9 + $0xe0] sm:$0xff]
    %v222 = vld [vmem:[#allocation9 + $0xe8] sm:$0xff]
    %v223 = vld [vmem:[#allocation9 + $0xf0] sm:$0xff]
    %v224 = vld [vmem:[#allocation9 + $0xf8] sm:$0xff]
    %v225 = vld [vmem:[#allocation9 + $0x100] sm:$0xff]
    %v226 = vld [vmem:[#allocation9 + $0x108] sm:$0xff]
    %v227 = vld [vmem:[#allocation9 + $0x110] sm:$0xff]
    %v228 = vld [vmem:[#allocation9 + $0x118] sm:$0xff]
    %v229 = vld [vmem:[#allocation9 + $0x120] sm:$0xff]
    %v230 = vld [vmem:[#allocation9 + $0x128] sm:$0xff]
    %v231 = vld [vmem:[#allocation9 + $0x130] sm:$0xff]
    %v232 = vld [vmem:[#allocation9 + $0x138] sm:$0xff]
    %v233 = vld [vmem:[#allocation9 + $0x140] sm:$0xff]
    %v234 = vld [vmem:[#allocation9 + $0x148] sm:$0xff]
    %v235 = vld [vmem:[#allocation9 + $0x150] sm:$0xff]
    %v236 = vld [vmem:[#allocation9 + $0x158] sm:$0xff]
    %v237 = vld [vmem:[#allocation9 + $0x160] sm:$0xff]
    %v238 = vld [vmem:[#allocation9 + $0x168] sm:$0xff]
    %v239 = vld [vmem:[#allocation9 + $0x170] sm:$0xff]
    %v240 = vld [vmem:[#allocation9 + $0x178] sm:$0xff]
    %v241 = vld [vmem:[#allocation9 + $0x180] sm:$0xff]
    %v242 = vld [vmem:[#allocation9 + $0x188] sm:$0xff]
    %v243 = vld [vmem:[#allocation9 + $0x190] sm:$0xff]
    %v244 = vld [vmem:[#allocation9 + $0x198] sm:$0xff]
    %v245 = vld [vmem:[#allocation9 + $0x1a0] sm:$0xff]
    %v246 = vld [vmem:[#allocation9 + $0x1a8] sm:$0xff]
    %v247 = vld [vmem:[#allocation9 + $0x1b0] sm:$0xff]
    %v248 = vld [vmem:[#allocation9 + $0x1b8] sm:$0xff]
    %v249 = vld [vmem:[#allocation9 + $0x1c0] sm:$0xff]
    %v250 = vld [vmem:[#allocation9 + $0x1c8] sm:$0xff]
    %v251 = vld [vmem:[#allocation9 + $0x1d0] sm:$0xff]
    %v252 = vld [vmem:[#allocation9 + $0x1d8] sm:$0xff]
    %v253 = vld [vmem:[#allocation9 + $0x1e0] sm:$0xff]
    %v254 = vld [vmem:[#allocation9 + $0x1e8] sm:$0xff]
    %v255 = vld [vmem:[#allocation9 + $0x1f0] sm:$0xff]
    %v256 = vld [vmem:[#allocation9 + $0x1f8] sm:$0xff]
    %v257 = vld [vmem:[#allocation11] ss:$2 sm:$0xf]
    %v259 = vlaneseq
    %v260 = vshrl.u32 %v259, 7
    %v261 = vsub.s32 0, %v260
    %v262 = vrot.slane %v257, %v261
    %v263 = vlaneseq
    %v264 = vshrl.u32 %v263, 7
    %v265 = vsub.s32 1, %v264
    %v266 = vrot.slane %v257, %v265
    %v267 = vlaneseq
    %v268 = vshrl.u32 %v267, 7
    %v269 = vsub.s32 2, %v268
    %v270 = vrot.slane %v257, %v269
    %v271 = vlaneseq
    %v272 = vshrl.u32 %v271, 7
    %v273 = vsub.s32 3, %v272
    %v274 = vrot.slane %v257, %v273
    %v343 = vunpack.c.l.b16 %v193
    %v344 = vunpack.c.h.b16 %v193
    %v345 = vunpack.c.l.b16 %v194
    %v346 = vunpack.c.h.b16 %v194
    %v347 = vunpack.c.l.b16 %v195
    %v348 = vunpack.c.h.b16 %v195
    %v349 = vunpack.c.l.b16 %v196
    %v350 = vunpack.c.h.b16 %v196
    %v351 = vunpack.c.l.b16 %v197
    %v352 = vunpack.c.h.b16 %v197
    %v353 = vunpack.c.l.b16 %v198
    %v354 = vunpack.c.h.b16 %v198
    %v355 = vunpack.c.l.b16 %v199
    %v356 = vunpack.c.h.b16 %v199
    %v357 = vunpack.c.l.b16 %v200
    %v358 = vunpack.c.h.b16 %v200
    %v359 = vunpack.c.l.b16 %v201
    %v360 = vunpack.c.h.b16 %v201
    %v361 = vunpack.c.l.b16 %v202
    %v362 = vunpack.c.h.b16 %v202
    %v363 = vunpack.c.l.b16 %v203
    %v364 = vunpack.c.h.b16 %v203
    %v365 = vunpack.c.l.b16 %v204
    %v366 = vunpack.c.h.b16 %v204
    %v367 = vunpack.c.l.b16 %v205
    %v368 = vunpack.c.h.b16 %v205
    %v369 = vunpack.c.l.b16 %v206
    %v370 = vunpack.c.h.b16 %v206
    %v371 = vunpack.c.l.b16 %v207
    %v372 = vunpack.c.h.b16 %v207
    %v373 = vunpack.c.l.b16 %v208
    %v374 = vunpack.c.h.b16 %v208
    %v375 = vunpack.c.l.b16 %v209
    %v376 = vunpack.c.h.b16 %v209
    %v377 = vunpack.c.l.b16 %v210
    %v378 = vunpack.c.h.b16 %v210
    %v379 = vunpack.c.l.b16 %v211
    %v380 = vunpack.c.h.b16 %v211
    %v381 = vunpack.c.l.b16 %v212
    %v382 = vunpack.c.h.b16 %v212
    %v383 = vunpack.c.l.b16 %v213
    %v384 = vunpack.c.h.b16 %v213
    %v385 = vunpack.c.l.b16 %v214
    %v386 = vunpack.c.h.b16 %v214
    %v387 = vunpack.c.l.b16 %v215
    %v388 = vunpack.c.h.b16 %v215
    %v389 = vunpack.c.l.b16 %v216
    %v390 = vunpack.c.h.b16 %v216
    %v391 = vunpack.c.l.b16 %v217
    %v392 = vunpack.c.h.b16 %v217
    %v393 = vunpack.c.l.b16 %v218
    %v394 = vunpack.c.h.b16 %v218
    %v395 = vunpack.c.l.b16 %v219
    %v396 = vunpack.c.h.b16 %v219
    %v397 = vunpack.c.l.b16 %v220
    %v398 = vunpack.c.h.b16 %v220
    %v399 = vunpack.c.l.b16 %v221
    %v400 = vunpack.c.h.b16 %v221
    %v401 = vunpack.c.l.b16 %v222
    %v402 = vunpack.c.h.b16 %v222
    %v403 = vunpack.c.l.b16 %v223
    %v404 = vunpack.c.h.b16 %v223
    %v405 = vunpack.c.l.b16 %v224
    %v406 = vunpack.c.h.b16 %v224
    %v407 = vunpack.c.l.b16 %v225
    %v408 = vunpack.c.h.b16 %v225
    %v409 = vunpack.c.l.b16 %v226
    %v410 = vunpack.c.h.b16 %v226
    %v411 = vunpack.c.l.b16 %v227
    %v412 = vunpack.c.h.b16 %v227
    %v413 = vunpack.c.l.b16 %v228
    %v414 = vunpack.c.h.b16 %v228
    %v415 = vunpack.c.l.b16 %v229
    %v416 = vunpack.c.h.b16 %v229
    %v417 = vunpack.c.l.b16 %v230
    %v418 = vunpack.c.h.b16 %v230
    %v419 = vunpack.c.l.b16 %v231
    %v420 = vunpack.c.h.b16 %v231
    %v421 = vunpack.c.l.b16 %v232
    %v422 = vunpack.c.h.b16 %v232
    %v423 = vunpack.c.l.b16 %v233
    %v424 = vunpack.c.h.b16 %v233
    %v425 = vunpack.c.l.b16 %v234
    %v426 = vunpack.c.h.b16 %v234
    %v427 = vunpack.c.l.b16 %v235
    %v428 = vunpack.c.h.b16 %v235
    %v429 = vunpack.c.l.b16 %v236
    %v430 = vunpack.c.h.b16 %v236
    %v431 = vunpack.c.l.b16 %v237
    %v432 = vunpack.c.h.b16 %v237
    %v433 = vunpack.c.l.b16 %v238
    %v434 = vunpack.c.h.b16 %v238
    %v435 = vunpack.c.l.b16 %v239
    %v436 = vunpack.c.h.b16 %v239
    %v437 = vunpack.c.l.b16 %v240
    %v438 = vunpack.c.h.b16 %v240
    %v439 = vunpack.c.l.b16 %v241
    %v440 = vunpack.c.h.b16 %v241
    %v441 = vunpack.c.l.b16 %v242
    %v442 = vunpack.c.h.b16 %v242
    %v443 = vunpack.c.l.b16 %v243
    %v444 = vunpack.c.h.b16 %v243
    %v445 = vunpack.c.l.b16 %v244
    %v446 = vunpack.c.h.b16 %v244
    %v447 = vunpack.c.l.b16 %v245
    %v448 = vunpack.c.h.b16 %v245
    %v449 = vunpack.c.l.b16 %v246
    %v450 = vunpack.c.h.b16 %v246
    %v451 = vunpack.c.l.b16 %v247
    %v452 = vunpack.c.h.b16 %v247
    %v453 = vunpack.c.l.b16 %v248
    %v454 = vunpack.c.h.b16 %v248
    %v455 = vunpack.c.l.b16 %v249
    %v456 = vunpack.c.h.b16 %v249
    %v457 = vunpack.c.l.b16 %v250
    %v458 = vunpack.c.h.b16 %v250
    %v459 = vunpack.c.l.b16 %v251
    %v460 = vunpack.c.h.b16 %v251
    %v461 = vunpack.c.l.b16 %v252
    %v462 = vunpack.c.h.b16 %v252
    %v463 = vunpack.c.l.b16 %v253
    %v464 = vunpack.c.h.b16 %v253
    %v465 = vunpack.c.l.b16 %v254
    %v466 = vunpack.c.h.b16 %v254
    %v467 = vunpack.c.l.b16 %v255
    %v468 = vunpack.c.h.b16 %v255
    %v469 = vunpack.c.l.b16 %v256
    %v470 = vunpack.c.h.b16 %v256
    %v471 = vpack.c.b16 %v347, %v343
    %v472 = vpack.c.b16 %v348, %v344
    %v473 = vpack.c.b16 %v349, %v345
    %v474 = vpack.c.b16 %v350, %v346
    %v475 = vpack.c.b16 %v355, %v351
    %v476 = vpack.c.b16 %v356, %v352
    %v477 = vpack.c.b16 %v357, %v353
    %v478 = vpack.c.b16 %v358, %v354
    %v479 = vpack.c.b16 %v363, %v359
    %v480 = vpack.c.b16 %v364, %v360
    %v481 = vpack.c.b16 %v365, %v361
    %v482 = vpack.c.b16 %v366, %v362
    %v483 = vpack.c.b16 %v371, %v367
    %v484 = vpack.c.b16 %v372, %v368
    %v485 = vpack.c.b16 %v373, %v369
    %v486 = vpack.c.b16 %v374, %v370
    %v487 = vpack.c.b16 %v379, %v375
    %v488 = vpack.c.b16 %v380, %v376
    %v489 = vpack.c.b16 %v381, %v377
    %v490 = vpack.c.b16 %v382, %v378
    %v491 = vpack.c.b16 %v387, %v383
    %v492 = vpack.c.b16 %v388, %v384
    %v493 = vpack.c.b16 %v389, %v385
    %v494 = vpack.c.b16 %v390, %v386
    %v495 = vpack.c.b16 %v395, %v391
    %v496 = vpack.c.b16 %v396, %v392
    %v497 = vpack.c.b16 %v397, %v393
    %v498 = vpack.c.b16 %v398, %v394
    %v499 = vpack.c.b16 %v403, %v399
    %v500 = vpack.c.b16 %v404, %v400
    %v501 = vpack.c.b16 %v405, %v401
    %v502 = vpack.c.b16 %v406, %v402
    %v503 = vpack.c.b16 %v411, %v407
    %v504 = vpack.c.b16 %v412, %v408
    %v505 = vpack.c.b16 %v413, %v409
    %v506 = vpack.c.b16 %v414, %v410
    %v507 = vpack.c.b16 %v419, %v415
    %v508 = vpack.c.b16 %v420, %v416
    %v509 = vpack.c.b16 %v421, %v417
    %v510 = vpack.c.b16 %v422, %v418
    %v511 = vpack.c.b16 %v427, %v423
    %v512 = vpack.c.b16 %v428, %v424
    %v513 = vpack.c.b16 %v429, %v425
    %v514 = vpack.c.b16 %v430, %v426
    %v515 = vpack.c.b16 %v435, %v431
    %v516 = vpack.c.b16 %v436, %v432
    %v517 = vpack.c.b16 %v437, %v433
    %v518 = vpack.c.b16 %v438, %v434
    %v519 = vpack.c.b16 %v443, %v439
    %v520 = vpack.c.b16 %v444, %v440
    %v521 = vpack.c.b16 %v445, %v441
    %v522 = vpack.c.b16 %v446, %v442
    %v523 = vpack.c.b16 %v451, %v447
    %v524 = vpack.c.b16 %v452, %v448
    %v525 = vpack.c.b16 %v453, %v449
    %v526 = vpack.c.b16 %v454, %v450
    %v527 = vpack.c.b16 %v459, %v455
    %v528 = vpack.c.b16 %v460, %v456
    %v529 = vpack.c.b16 %v461, %v457
    %v530 = vpack.c.b16 %v462, %v458
    %v531 = vpack.c.b16 %v467, %v463
    %v532 = vpack.c.b16 %v468, %v464
    %v533 = vpack.c.b16 %v469, %v465
    %v534 = vpack.c.b16 %v470, %v466
    %599 = vmatprep.subr.bf16.mxu0 %v472
    %600 = vmatpush1.bf16.msra.mxu0 %v471
    %601 = vmatprep.subr.bf16.mxu0 %v476
    %602 = vmatpush1.bf16.msra.mxu0 %v475
    %603 = vmatprep.subr.bf16.mxu0 %v480
    %604 = vmatpush1.bf16.msra.mxu0 %v479
    %605 = vmatprep.subr.bf16.mxu0 %v484
    %606 = vmatpush1.bf16.msra.mxu0 %v483
    %607 = vmatprep.subr.bf16.mxu0 %v488
    %608 = vmatpush1.bf16.msra.mxu0 %v487
    %609 = vmatprep.subr.bf16.mxu0 %v492
    %610 = vmatpush1.bf16.msra.mxu0 %v491
    %611 = vmatprep.subr.bf16.mxu0 %v496
    %612 = vmatpush1.bf16.msra.mxu0 %v495
    %613 = vmatprep.subr.bf16.mxu0 %v500
    %614 = vmatpush1.bf16.msra.mxu0 %v499
    %615 = vmatprep.subr.bf16.mxu0 %v504
    %616 = vmatpush1.bf16.msra.mxu0 %v503
    %617 = vmatprep.subr.bf16.mxu0 %v508
    %618 = vmatpush1.bf16.msra.mxu0 %v507
    %619 = vmatprep.subr.bf16.mxu0 %v512
    %620 = vmatpush1.bf16.msra.mxu0 %v511
    %621 = vmatprep.subr.bf16.mxu0 %v516
    %622 = vmatpush1.bf16.msra.mxu0 %v515
    %623 = vmatprep.subr.bf16.mxu0 %v520
    %624 = vmatpush1.bf16.msra.mxu0 %v519
    %625 = vmatprep.subr.bf16.mxu0 %v524
    %626 = vmatpush1.bf16.msra.mxu0 %v523
    %627 = vmatprep.subr.bf16.mxu0 %v528
    %628 = vmatpush1.bf16.msra.mxu0 %v527
    %629 = vmatprep.subr.bf16.mxu0 %v532
    %630 = vmatpush1.bf16.msra.mxu0 %v531
    %631 = vmatprep.mubr.bf16.mxu0 %v192
    %632 = vmatmul.mubr.bf16.gmra.mrb[0].mxu0 %v191
    %v633 = vpop.f32.mrb[0].mxu0
    %v634 = vadd.f32 %v262, %v633
    %v635 = vpop.f32.mrb[0].mxu0
    %v636 = vadd.f32 %v266, %v635
    %v637 = vpop.f32.mrb[0].mxu0
    %v638 = vpop.f32.mrb[0].mxu0
    %639 = vdwg.mxu0
    %640 = vmatprep.subr.bf16.mxu0 %v474
    %641 = vmatpush1.bf16.msra.mxu0 %v473
    %642 = vmatprep.subr.bf16.mxu0 %v478
    %643 = vmatpush1.bf16.msra.mxu0 %v477
    %644 = vmatprep.subr.bf16.mxu0 %v482
    %645 = vmatpush1.bf16.msra.mxu0 %v481
    %646 = vmatprep.subr.bf16.mxu0 %v486
    %647 = vmatpush1.bf16.msra.mxu0 %v485
    %648 = vmatprep.subr.bf16.mxu0 %v490
    %649 = vmatpush1.bf16.msra.mxu0 %v489
    %650 = vmatprep.subr.bf16.mxu0 %v494
    %651 = vmatpush1.bf16.msra.mxu0 %v493
    %652 = vmatprep.subr.bf16.mxu0 %v498
    %653 = vmatpush1.bf16.msra.mxu0 %v497
    %654 = vmatprep.subr.bf16.mxu0 %v502
    %655 = vmatpush1.bf16.msra.mxu0 %v501
    %656 = vmatprep.subr.bf16.mxu0 %v506
    %657 = vmatpush1.bf16.msra.mxu0 %v505
    %658 = vmatprep.subr.bf16.mxu0 %v510
    %659 = vmatpush1.bf16.msra.mxu0 %v509
    %660 = vmatprep.subr.bf16.mxu0 %v514
    %661 = vmatpush1.bf16.msra.mxu0 %v513
    %662 = vmatprep.subr.bf16.mxu0 %v518
    %663 = vmatpush1.bf16.msra.mxu0 %v517
    %664 = vmatprep.subr.bf16.mxu0 %v522
    %665 = vmatpush1.bf16.msra.mxu0 %v521
    %666 = vmatprep.subr.bf16.mxu0 %v526
    %667 = vmatpush1.bf16.msra.mxu0 %v525
    %668 = vmatprep.subr.bf16.mxu0 %v530
    %669 = vmatpush1.bf16.msra.mxu0 %v529
    %670 = vmatprep.subr.bf16.mxu0 %v534
    %671 = vmatpush1.bf16.msra.mxu0 %v533
    %672 = vmatprep.mubr.bf16.mxu0 %v192
    %673 = vmatmul.mubr.bf16.gmra.mrb[0].mxu0 %v191
    %v674 = vpop.f32.mrb[0].mxu0
    %v675 = vadd.f32 %v270, %v674
    %v676 = vpop.f32.mrb[0].mxu0
    %v677 = vadd.f32 %v274, %v676
    %v678 = vpop.f32.mrb[0].mxu0
    %v679 = vpop.f32.mrb[0].mxu0
    %680 = vdwg.mxu0
    %v681 = vxor.u32 %v634, 2147483648
    %v682 = vmul.f32 %v681, 1.442695
    %v683 = vpow.pop %v682
    %v684 = vadd.f32 %v683, 1.0
    %v685 = vrcp.pop %v684
    %v686 = vmul.f32 1.0, %v685
    %v687 = vxor.u32 %v636, 2147483648
    %v688 = vmul.f32 %v687, 1.442695
    %v689 = vpow.pop %v688
    %v690 = vadd.f32 %v689, 1.0
    %v691 = vrcp.pop %v690
    %v692 = vmul.f32 1.0, %v691
    %v693 = vtanh.pop %v675
    %v694 = vxor.u32 %v677, 2147483648
    %v695 = vmul.f32 %v694, 1.442695
    %v696 = vpow.pop %v695
    %v697 = vadd.f32 %v696, 1.0
    %v698 = vrcp.pop %v697
    %v699 = vmul.f32 1.0, %v698
    %v700 = vld [vmem:[%s3] sm:$0x3]
    %v701 = vmul.f32 %v692, %v700
    %v702 = vmul.f32 %v686, %v693
    %v703 = vadd.f32 %v701, %v702
    %v704 = vtanh.pop %v703
    %v705 = vmul.f32 %v699, %v704
    %706 = vst [vmem:[%s15] sm:$0x3] %v705
    %707 = vst [vmem:[%s16] sm:$0x3] %v703
    %s708 = scalar_lea.vmem %s2, 2
    %v709 = vld [vmem:[%s708] sm:$0x3]
    %v710 = vpack.c.bf16 %v705, %v705
    %v711 = vpack.c.bf16 %v709, %v709
    %s712 = scalar_lea.vmem [#allocation9], 512
    %v713 = vld [vmem:[%s712] sm:$0xff]
    %v714 = vld [vmem:[%s712 + $0x8] sm:$0xff]
    %v715 = vld [vmem:[%s712 + $0x10] sm:$0xff]
    %v716 = vld [vmem:[%s712 + $0x18] sm:$0xff]
    %v717 = vld [vmem:[%s712 + $0x20] sm:$0xff]
    %v718 = vld [vmem:[%s712 + $0x28] sm:$0xff]
    %v719 = vld [vmem:[%s712 + $0x30] sm:$0xff]
    %v720 = vld [vmem:[%s712 + $0x38] sm:$0xff]
    %v721 = vld [vmem:[%s712 + $0x40] sm:$0xff]
    %v722 = vld [vmem:[%s712 + $0x48] sm:$0xff]
    %v723 = vld [vmem:[%s712 + $0x50] sm:$0xff]
    %v724 = vld [vmem:[%s712 + $0x58] sm:$0xff]
    %v725 = vld [vmem:[%s712 + $0x60] sm:$0xff]
    %v726 = vld [vmem:[%s712 + $0x68] sm:$0xff]
    %v727 = vld [vmem:[%s712 + $0x70] sm:$0xff]
    %v728 = vld [vmem:[%s712 + $0x78] sm:$0xff]
    %v729 = vld [vmem:[%s712 + $0x80] sm:$0xff]
    %v730 = vld [vmem:[%s712 + $0x88] sm:$0xff]
    %v731 = vld [vmem:[%s712 + $0x90] sm:$0xff]
    %v732 = vld [vmem:[%s712 + $0x98] sm:$0xff]
    %v733 = vld [vmem:[%s712 + $0xa0] sm:$0xff]
    %v734 = vld [vmem:[%s712 + $0xa8] sm:$0xff]
    %v735 = vld [vmem:[%s712 + $0xb0] sm:$0xff]
    %v736 = vld [vmem:[%s712 + $0xb8] sm:$0xff]
    %v737 = vld [vmem:[%s712 + $0xc0] sm:$0xff]
    %v738 = vld [vmem:[%s712 + $0xc8] sm:$0xff]
    %v739 = vld [vmem:[%s712 + $0xd0] sm:$0xff]
    %v740 = vld [vmem:[%s712 + $0xd8] sm:$0xff]
    %v741 = vld [vmem:[%s712 + $0xe0] sm:$0xff]
    %v742 = vld [vmem:[%s712 + $0xe8] sm:$0xff]
    %v743 = vld [vmem:[%s712 + $0xf0] sm:$0xff]
    %v744 = vld [vmem:[%s712 + $0xf8] sm:$0xff]
    %v745 = vld [vmem:[%s712 + $0x100] sm:$0xff]
    %v746 = vld [vmem:[%s712 + $0x108] sm:$0xff]
    %v747 = vld [vmem:[%s712 + $0x110] sm:$0xff]
    %v748 = vld [vmem:[%s712 + $0x118] sm:$0xff]
    %v749 = vld [vmem:[%s712 + $0x120] sm:$0xff]
    %v750 = vld [vmem:[%s712 + $0x128] sm:$0xff]
    %v751 = vld [vmem:[%s712 + $0x130] sm:$0xff]
    %v752 = vld [vmem:[%s712 + $0x138] sm:$0xff]
    %v753 = vld [vmem:[%s712 + $0x140] sm:$0xff]
    %v754 = vld [vmem:[%s712 + $0x148] sm:$0xff]
    %v755 = vld [vmem:[%s712 + $0x150] sm:$0xff]
    %v756 = vld [vmem:[%s712 + $0x158] sm:$0xff]
    %v757 = vld [vmem:[%s712 + $0x160] sm:$0xff]
    %v758 = vld [vmem:[%s712 + $0x168] sm:$0xff]
    %v759 = vld [vmem:[%s712 + $0x170] sm:$0xff]
    %v760 = vld [vmem:[%s712 + $0x178] sm:$0xff]
    %v761 = vld [vmem:[%s712 + $0x180] sm:$0xff]
    %v762 = vld [vmem:[%s712 + $0x188] sm:$0xff]
    %v763 = vld [vmem:[%s712 + $0x190] sm:$0xff]
    %v764 = vld [vmem:[%s712 + $0x198] sm:$0xff]
    %v765 = vld [vmem:[%s712 + $0x1a0] sm:$0xff]
    %v766 = vld [vmem:[%s712 + $0x1a8] sm:$0xff]
    %v767 = vld [vmem:[%s712 + $0x1b0] sm:$0xff]
    %v768 = vld [vmem:[%s712 + $0x1b8] sm:$0xff]
    %v769 = vld [vmem:[%s712 + $0x1c0] sm:$0xff]
    %v770 = vld [vmem:[%s712 + $0x1c8] sm:$0xff]
    %v771 = vld [vmem:[%s712 + $0x1d0] sm:$0xff]
    %v772 = vld [vmem:[%s712 + $0x1d8] sm:$0xff]
    %v773 = vld [vmem:[%s712 + $0x1e0] sm:$0xff]
    %v774 = vld [vmem:[%s712 + $0x1e8] sm:$0xff]
    %v775 = vld [vmem:[%s712 + $0x1f0] sm:$0xff]
    %v776 = vld [vmem:[%s712 + $0x1f8] sm:$0xff]
    %s777 = scalar_lea.vmem [#allocation11], 1
    %v778 = vld [vmem:[%s777] ss:$2 sm:$0xf]
    %v780 = vlaneseq
    %v781 = vshrl.u32 %v780, 7
    %v782 = vsub.s32 0, %v781
    %v783 = vrot.slane %v778, %v782
    %v784 = vlaneseq
    %v785 = vshrl.u32 %v784, 7
    %v786 = vsub.s32 1, %v785
    %v787 = vrot.slane %v778, %v786
    %v788 = vlaneseq
    %v789 = vshrl.u32 %v788, 7
    %v790 = vsub.s32 2, %v789
    %v791 = vrot.slane %v778, %v790
    %v792 = vlaneseq
    %v793 = vshrl.u32 %v792, 7
    %v794 = vsub.s32 3, %v793
    %v795 = vrot.slane %v778, %v794
    %v864 = vunpack.c.l.b16 %v713
    %v865 = vunpack.c.h.b16 %v713
    %v866 = vunpack.c.l.b16 %v714
    %v867 = vunpack.c.h.b16 %v714
    %v868 = vunpack.c.l.b16 %v715
    %v869 = vunpack.c.h.b16 %v715
    %v870 = vunpack.c.l.b16 %v716
    %v871 = vunpack.c.h.b16 %v716
    %v872 = vunpack.c.l.b16 %v717
    %v873 = vunpack.c.h.b16 %v717
    %v874 = vunpack.c.l.b16 %v718
    %v875 = vunpack.c.h.b16 %v718
    %v876 = vunpack.c.l.b16 %v719
    %v877 = vunpack.c.h.b16 %v719
    %v878 = vunpack.c.l.b16 %v720
    %v879 = vunpack.c.h.b16 %v720
    %v880 = vunpack.c.l.b16 %v721
    %v881 = vunpack.c.h.b16 %v721
    %v882 = vunpack.c.l.b16 %v722
    %v883 = vunpack.c.h.b16 %v722
    %v884 = vunpack.c.l.b16 %v723
    %v885 = vunpack.c.h.b16 %v723
    %v886 = vunpack.c.l.b16 %v724
    %v887 = vunpack.c.h.b16 %v724
    %v888 = vunpack.c.l.b16 %v725
    %v889 = vunpack.c.h.b16 %v725
    %v890 = vunpack.c.l.b16 %v726
    %v891 = vunpack.c.h.b16 %v726
    %v892 = vunpack.c.l.b16 %v727
    %v893 = vunpack.c.h.b16 %v727
    %v894 = vunpack.c.l.b16 %v728
    %v895 = vunpack.c.h.b16 %v728
    %v896 = vunpack.c.l.b16 %v729
    %v897 = vunpack.c.h.b16 %v729
    %v898 = vunpack.c.l.b16 %v730
    %v899 = vunpack.c.h.b16 %v730
    %v900 = vunpack.c.l.b16 %v731
    %v901 = vunpack.c.h.b16 %v731
    %v902 = vunpack.c.l.b16 %v732
    %v903 = vunpack.c.h.b16 %v732
    %v904 = vunpack.c.l.b16 %v733
    %v905 = vunpack.c.h.b16 %v733
    %v906 = vunpack.c.l.b16 %v734
    %v907 = vunpack.c.h.b16 %v734
    %v908 = vunpack.c.l.b16 %v735
    %v909 = vunpack.c.h.b16 %v735
    %v910 = vunpack.c.l.b16 %v736
    %v911 = vunpack.c.h.b16 %v736
    %v912 = vunpack.c.l.b16 %v737
    %v913 = vunpack.c.h.b16 %v737
    %v914 = vunpack.c.l.b16 %v738
    %v915 = vunpack.c.h.b16 %v738
    %v916 = vunpack.c.l.b16 %v739
    %v917 = vunpack.c.h.b16 %v739
    %v918 = vunpack.c.l.b16 %v740
    %v919 = vunpack.c.h.b16 %v740
    %v920 = vunpack.c.l.b16 %v741
    %v921 = vunpack.c.h.b16 %v741
    %v922 = vunpack.c.l.b16 %v742
    %v923 = vunpack.c.h.b16 %v742
    %v924 = vunpack.c.l.b16 %v743
    %v925 = vunpack.c.h.b16 %v743
    %v926 = vunpack.c.l.b16 %v744
    %v927 = vunpack.c.h.b16 %v744
    %v928 = vunpack.c.l.b16 %v745
    %v929 = vunpack.c.h.b16 %v745
    %v930 = vunpack.c.l.b16 %v746
    %v931 = vunpack.c.h.b16 %v746
    %v932 = vunpack.c.l.b16 %v747
    %v933 = vunpack.c.h.b16 %v747
    %v934 = vunpack.c.l.b16 %v748
    %v935 = vunpack.c.h.b16 %v748
    %v936 = vunpack.c.l.b16 %v749
    %v937 = vunpack.c.h.b16 %v749
    %v938 = vunpack.c.l.b16 %v750
    %v939 = vunpack.c.h.b16 %v750
    %v940 = vunpack.c.l.b16 %v751
    %v941 = vunpack.c.h.b16 %v751
    %v942 = vunpack.c.l.b16 %v752
    %v943 = vunpack.c.h.b16 %v752
    %v944 = vunpack.c.l.b16 %v753
    %v945 = vunpack.c.h.b16 %v753
    %v946 = vunpack.c.l.b16 %v754
    %v947 = vunpack.c.h.b16 %v754
    %v948 = vunpack.c.l.b16 %v755
    %v949 = vunpack.c.h.b16 %v755
    %v950 = vunpack.c.l.b16 %v756
    %v951 = vunpack.c.h.b16 %v756
    %v952 = vunpack.c.l.b16 %v757
    %v953 = vunpack.c.h.b16 %v757
    %v954 = vunpack.c.l.b16 %v758
    %v955 = vunpack.c.h.b16 %v758
    %v956 = vunpack.c.l.b16 %v759
    %v957 = vunpack.c.h.b16 %v759
    %v958 = vunpack.c.l.b16 %v760
    %v959 = vunpack.c.h.b16 %v760
    %v960 = vunpack.c.l.b16 %v761
    %v961 = vunpack.c.h.b16 %v761
    %v962 = vunpack.c.l.b16 %v762
    %v963 = vunpack.c.h.b16 %v762
    %v964 = vunpack.c.l.b16 %v763
    %v965 = vunpack.c.h.b16 %v763
    %v966 = vunpack.c.l.b16 %v764
    %v967 = vunpack.c.h.b16 %v764
    %v968 = vunpack.c.l.b16 %v765
    %v969 = vunpack.c.h.b16 %v765
    %v970 = vunpack.c.l.b16 %v766
    %v971 = vunpack.c.h.b16 %v766
    %v972 = vunpack.c.l.b16 %v767
    %v973 = vunpack.c.h.b16 %v767
    %v974 = vunpack.c.l.b16 %v768
    %v975 = vunpack.c.h.b16 %v768
    %v976 = vunpack.c.l.b16 %v769
    %v977 = vunpack.c.h.b16 %v769
    %v978 = vunpack.c.l.b16 %v770
    %v979 = vunpack.c.h.b16 %v770
    %v980 = vunpack.c.l.b16 %v771
    %v981 = vunpack.c.h.b16 %v771
    %v982 = vunpack.c.l.b16 %v772
    %v983 = vunpack.c.h.b16 %v772
    %v984 = vunpack.c.l.b16 %v773
    %v985 = vunpack.c.h.b16 %v773
    %v986 = vunpack.c.l.b16 %v774
    %v987 = vunpack.c.h.b16 %v774
    %v988 = vunpack.c.l.b16 %v775
    %v989 = vunpack.c.h.b16 %v775
    %v990 = vunpack.c.l.b16 %v776
    %v991 = vunpack.c.h.b16 %v776
    %v992 = vpack.c.b16 %v868, %v864
    %v993 = vpack.c.b16 %v869, %v865
    %v994 = vpack.c.b16 %v870, %v866
    %v995 = vpack.c.b16 %v871, %v867
    %v996 = vpack.c.b16 %v876, %v872
    %v997 = vpack.c.b16 %v877, %v873
    %v998 = vpack.c.b16 %v878, %v874
    %v999 = vpack.c.b16 %v879, %v875
    %v1000 = vpack.c.b16 %v884, %v880
    %v1001 = vpack.c.b16 %v885, %v881
    %v1002 = vpack.c.b16 %v886, %v882
    %v1003 = vpack.c.b16 %v887, %v883
    %v1004 = vpack.c.b16 %v892, %v888
    %v1005 = vpack.c.b16 %v893, %v889
    %v1006 = vpack.c.b16 %v894, %v890
    %v1007 = vpack.c.b16 %v895, %v891
    %v1008 = vpack.c.b16 %v900, %v896
    %v1009 = vpack.c.b16 %v901, %v897
    %v1010 = vpack.c.b16 %v902, %v898
    %v1011 = vpack.c.b16 %v903, %v899
    %v1012 = vpack.c.b16 %v908, %v904
    %v1013 = vpack.c.b16 %v909, %v905
    %v1014 = vpack.c.b16 %v910, %v906
    %v1015 = vpack.c.b16 %v911, %v907
    %v1016 = vpack.c.b16 %v916, %v912
    %v1017 = vpack.c.b16 %v917, %v913
    %v1018 = vpack.c.b16 %v918, %v914
    %v1019 = vpack.c.b16 %v919, %v915
    %v1020 = vpack.c.b16 %v924, %v920
    %v1021 = vpack.c.b16 %v925, %v921
    %v1022 = vpack.c.b16 %v926, %v922
    %v1023 = vpack.c.b16 %v927, %v923
    %v1024 = vpack.c.b16 %v932, %v928
    %v1025 = vpack.c.b16 %v933, %v929
    %v1026 = vpack.c.b16 %v934, %v930
    %v1027 = vpack.c.b16 %v935, %v931
    %v1028 = vpack.c.b16 %v940, %v936
    %v1029 = vpack.c.b16 %v941, %v937
    %v1030 = vpack.c.b16 %v942, %v938
    %v1031 = vpack.c.b16 %v943, %v939
    %v1032 = vpack.c.b16 %v948, %v944
    %v1033 = vpack.c.b16 %v949, %v945
    %v1034 = vpack.c.b16 %v950, %v946
    %v1035 = vpack.c.b16 %v951, %v947
    %v1036 = vpack.c.b16 %v956, %v952
    %v1037 = vpack.c.b16 %v957, %v953
    %v1038 = vpack.c.b16 %v958, %v954
    %v1039 = vpack.c.b16 %v959, %v955
    %v1040 = vpack.c.b16 %v964, %v960
    %v1041 = vpack.c.b16 %v965, %v961
    %v1042 = vpack.c.b16 %v966, %v962
    %v1043 = vpack.c.b16 %v967, %v963
    %v1044 = vpack.c.b16 %v972, %v968
    %v1045 = vpack.c.b16 %v973, %v969
    %v1046 = vpack.c.b16 %v974, %v970
    %v1047 = vpack.c.b16 %v975, %v971
    %v1048 = vpack.c.b16 %v980, %v976
    %v1049 = vpack.c.b16 %v981, %v977
    %v1050 = vpack.c.b16 %v982, %v978
    %v1051 = vpack.c.b16 %v983, %v979
    %v1052 = vpack.c.b16 %v988, %v984
    %v1053 = vpack.c.b16 %v989, %v985
    %v1054 = vpack.c.b16 %v990, %v986
    %v1055 = vpack.c.b16 %v991, %v987
    %1120 = vmatprep.subr.bf16.mxu0 %v993
    %1121 = vmatpush1.bf16.msra.mxu0 %v992
    %1122 = vmatprep.subr.bf16.mxu0 %v997
    %1123 = vmatpush1.bf16.msra.mxu0 %v996
    %1124 = vmatprep.subr.bf16.mxu0 %v1001
    %1125 = vmatpush1.bf16.msra.mxu0 %v1000
    %1126 = vmatprep.subr.bf16.mxu0 %v1005
    %1127 = vmatpush1.bf16.msra.mxu0 %v1004
    %1128 = vmatprep.subr.bf16.mxu0 %v1009
    %1129 = vmatpush1.bf16.msra.mxu0 %v1008
    %1130 = vmatprep.subr.bf16.mxu0 %v1013
    %1131 = vmatpush1.bf16.msra.mxu0 %v1012
    %1132 = vmatprep.subr.bf16.mxu0 %v1017
    %1133 = vmatpush1.bf16.msra.mxu0 %v1016
    %1134 = vmatprep.subr.bf16.mxu0 %v1021
    %1135 = vmatpush1.bf16.msra.mxu0 %v1020
    %1136 = vmatprep.subr.bf16.mxu0 %v1025
    %1137 = vmatpush1.bf16.msra.mxu0 %v1024
    %1138 = vmatprep.subr.bf16.mxu0 %v1029
    %1139 = vmatpush1.bf16.msra.mxu0 %v1028
    %1140 = vmatprep.subr.bf16.mxu0 %v1033
    %1141 = vmatpush1.bf16.msra.mxu0 %v1032
    %1142 = vmatprep.subr.bf16.mxu0 %v1037
    %1143 = vmatpush1.bf16.msra.mxu0 %v1036
    %1144 = vmatprep.subr.bf16.mxu0 %v1041
    %1145 = vmatpush1.bf16.msra.mxu0 %v1040
    %1146 = vmatprep.subr.bf16.mxu0 %v1045
    %1147 = vmatpush1.bf16.msra.mxu0 %v1044
    %1148 = vmatprep.subr.bf16.mxu0 %v1049
    %1149 = vmatpush1.bf16.msra.mxu0 %v1048
    %1150 = vmatprep.subr.bf16.mxu0 %v1053
    %1151 = vmatpush1.bf16.msra.mxu0 %v1052
    %1152 = vmatprep.mubr.bf16.mxu0 %v711
    %1153 = vmatmul.mubr.bf16.gmra.mrb[0].mxu0 %v710
    %v1154 = vpop.f32.mrb[0].mxu0
    %v1155 = vadd.f32 %v783, %v1154
    %v1156 = vpop.f32.mrb[0].mxu0
    %v1157 = vadd.f32 %v787, %v1156
    %v1158 = vpop.f32.mrb[0].mxu0
    %v1159 = vpop.f32.mrb[0].mxu0
    %1160 = vdwg.mxu0
    %1161 = vmatprep.subr.bf16.mxu0 %v995
    %1162 = vmatpush1.bf16.msra.mxu0 %v994
    %1163 = vmatprep.subr.bf16.mxu0 %v999
    %1164 = vmatpush1.bf16.msra.mxu0 %v998
    %1165 = vmatprep.subr.bf16.mxu0 %v1003
    %1166 = vmatpush1.bf16.msra.mxu0 %v1002
    %1167 = vmatprep.subr.bf16.mxu0 %v1007
    %1168 = vmatpush1.bf16.msra.mxu0 %v1006
    %1169 = vmatprep.subr.bf16.mxu0 %v1011
    %1170 = vmatpush1.bf16.msra.mxu0 %v1010
    %1171 = vmatprep.subr.bf16.mxu0 %v1015
    %1172 = vmatpush1.bf16.msra.mxu0 %v1014
    %1173 = vmatprep.subr.bf16.mxu0 %v1019
    %1174 = vmatpush1.bf16.msra.mxu0 %v1018
    %1175 = vmatprep.subr.bf16.mxu0 %v1023
    %1176 = vmatpush1.bf16.msra.mxu0 %v1022
    %1177 = vmatprep.subr.bf16.mxu0 %v1027
    %1178 = vmatpush1.bf16.msra.mxu0 %v1026
    %1179 = vmatprep.subr.bf16.mxu0 %v1031
    %1180 = vmatpush1.bf16.msra.mxu0 %v1030
    %1181 = vmatprep.subr.bf16.mxu0 %v1035
    %1182 = vmatpush1.bf16.msra.mxu0 %v1034
    %1183 = vmatprep.subr.bf16.mxu0 %v1039
    %1184 = vmatpush1.bf16.msra.mxu0 %v1038
    %1185 = vmatprep.subr.bf16.mxu0 %v1043
    %1186 = vmatpush1.bf16.msra.mxu0 %v1042
    %1187 = vmatprep.subr.bf16.mxu0 %v1047
    %1188 = vmatpush1.bf16.msra.mxu0 %v1046
    %1189 = vmatprep.subr.bf16.mxu0 %v1051
    %1190 = vmatpush1.bf16.msra.mxu0 %v1050
    %1191 = vmatprep.subr.bf16.mxu0 %v1055
    %1192 = vmatpush1.bf16.msra.mxu0 %v1054
    %1193 = vmatprep.mubr.bf16.mxu0 %v711
    %1194 = vmatmul.mubr.bf16.gmra.mrb[0].mxu0 %v710
    %v1195 = vpop.f32.mrb[0].mxu0
    %v1196 = vadd.f32 %v791, %v1195
    %v1197 = vpop.f32.mrb[0].mxu0
    %v1198 = vadd.f32 %v795, %v1197
    %v1199 = vpop.f32.mrb[0].mxu0
    %v1200 = vpop.f32.mrb[0].mxu0
    %1201 = vdwg.mxu0
    %v1202 = vxor.u32 %v1155, 2147483648
    %v1203 = vmul.f32 %v1202, 1.442695
    %v1204 = vpow.pop %v1203
    %v1205 = vadd.f32 %v1204, 1.0
    %v1206 = vrcp.pop %v1205
    %v1207 = vmul.f32 1.0, %v1206
    %v1208 = vxor.u32 %v1157, 2147483648
    %v1209 = vmul.f32 %v1208, 1.442695
    %v1210 = vpow.pop %v1209
    %v1211 = vadd.f32 %v1210, 1.0
    %v1212 = vrcp.pop %v1211
    %v1213 = vmul.f32 1.0, %v1212
    %v1214 = vtanh.pop %v1196
    %v1215 = vxor.u32 %v1198, 2147483648
    %v1216 = vmul.f32 %v1215, 1.442695
    %v1217 = vpow.pop %v1216
    %v1218 = vadd.f32 %v1217, 1.0
    %v1219 = vrcp.pop %v1218
    %v1220 = vmul.f32 1.0, %v1219
    %s1221 = scalar_lea.vmem %s3, 2
    %v1222 = vld [vmem:[%s1221] sm:$0x3]
    %v1223 = vmul.f32 %v1213, %v1222
    %v1224 = vmul.f32 %v1207, %v1214
    %v1225 = vadd.f32 %v1223, %v1224
    %v1226 = vtanh.pop %v1225
    %v1227 = vmul.f32 %v1220, %v1226
    %s1228 = scalar_lea.vmem %s15, 2
    %1229 = vst [vmem:[%s1228] sm:$0x3] %v1227
    %s1230 = scalar_lea.vmem %s16, 2
    %1231 = vst [vmem:[%s1230] sm:$0x3] %v1225
    %v1232 = vpack.c.bf16 %v1227, %v1227
    %v1233 = vld [vmem:[#allocation12] sm:$0xf]
    %v1234 = vld [vmem:[#allocation12 + $0x4] sm:$0xf]
    %v1235 = vld [vmem:[#allocation12 + $0x8] sm:$0xf]
    %v1236 = vld [vmem:[#allocation12 + $0xc] sm:$0xf]
    %v1237 = vld [vmem:[#allocation12 + $0x10] sm:$0xf]
    %v1238 = vld [vmem:[#allocation12 + $0x14] sm:$0xf]
    %v1239 = vld [vmem:[#allocation12 + $0x18] sm:$0xf]
    %v1240 = vld [vmem:[#allocation12 + $0x1c] sm:$0xf]
    %v1241 = vld [vmem:[#allocation12 + $0x20] sm:$0xf]
    %v1242 = vld [vmem:[#allocation12 + $0x24] sm:$0xf]
    %v1243 = vld [vmem:[#allocation12 + $0x28] sm:$0xf]
    %v1244 = vld [vmem:[#allocation12 + $0x2c] sm:$0xf]
    %v1245 = vld [vmem:[#allocation12 + $0x30] sm:$0xf]
    %v1246 = vld [vmem:[#allocation12 + $0x34] sm:$0xf]
    %v1247 = vld [vmem:[#allocation12 + $0x38] sm:$0xf]
    %v1248 = vld [vmem:[#allocation12 + $0x3c] sm:$0xf]
    %v1265 = vunpack.c.l.b16 %v1233
    %v1266 = vunpack.c.l.b16 %v1234
    %v1267 = vunpack.c.l.b16 %v1235
    %v1268 = vunpack.c.l.b16 %v1236
    %v1269 = vunpack.c.l.b16 %v1237
    %v1270 = vunpack.c.l.b16 %v1238
    %v1271 = vunpack.c.l.b16 %v1239
    %v1272 = vunpack.c.l.b16 %v1240
    %v1273 = vunpack.c.l.b16 %v1241
    %v1274 = vunpack.c.l.b16 %v1242
    %v1275 = vunpack.c.l.b16 %v1243
    %v1276 = vunpack.c.l.b16 %v1244
    %v1277 = vunpack.c.l.b16 %v1245
    %v1278 = vunpack.c.l.b16 %v1246
    %v1279 = vunpack.c.l.b16 %v1247
    %v1280 = vunpack.c.l.b16 %v1248
    %v1281 = vpack.c.b16 %v1266, %v1265
    %v1282 = vpack.c.b16 %v1268, %v1267
    %v1283 = vpack.c.b16 %v1270, %v1269
    %v1284 = vpack.c.b16 %v1272, %v1271
    %v1285 = vpack.c.b16 %v1274, %v1273
    %v1286 = vpack.c.b16 %v1276, %v1275
    %v1287 = vpack.c.b16 %v1278, %v1277
    %v1288 = vpack.c.b16 %v1280, %v1279
    %1297 = vmatprep.subr.bf16.mxu0 0
    %1298 = vmatpush1.bf16.msra.mxu0 %v1281
    %1299 = vmatprep.subr.bf16.mxu0 0
    %1300 = vmatpush1.bf16.msra.mxu0 %v1282
    %1301 = vmatprep.subr.bf16.mxu0 0
    %1302 = vmatpush1.bf16.msra.mxu0 %v1283
    %1303 = vmatprep.subr.bf16.mxu0 0
    %1304 = vmatpush1.bf16.msra.mxu0 %v1284
    %1305 = vmatprep.subr.bf16.mxu0 0
    %1306 = vmatpush1.bf16.msra.mxu0 %v1285
    %1307 = vmatprep.subr.bf16.mxu0 0
    %1308 = vmatpush1.bf16.msra.mxu0 %v1286
    %1309 = vmatprep.subr.bf16.mxu0 0
    %1310 = vmatpush1.bf16.msra.mxu0 %v1287
    %1311 = vmatprep.subr.bf16.mxu0 0
    %1312 = vmatpush1.bf16.msra.mxu0 %v1288
    %1313 = vmatprep.subr.bf16.mxu0 0
    %1314 = vmatpush1.bf16.msra.mxu0 0
    %1315 = vmatprep.subr.bf16.mxu0 0
    %1316 = vmatpush1.bf16.msra.mxu0 0
    %1317 = vmatprep.subr.bf16.mxu0 0
    %1318 = vmatpush1.bf16.msra.mxu0 0
    %1319 = vmatprep.subr.bf16.mxu0 0
    %1320 = vmatpush1.bf16.msra.mxu0 0
    %1321 = vmatprep.subr.bf16.mxu0 0
    %1322 = vmatpush1.bf16.msra.mxu0 0
    %1323 = vmatprep.subr.bf16.mxu0 0
    %1324 = vmatpush1.bf16.msra.mxu0 0
    %1325 = vmatprep.subr.bf16.mxu0 0
    %1326 = vmatpush1.bf16.msra.mxu0 0
    %1327 = vmatprep.subr.bf16.mxu0 0
    %1328 = vmatpush1.bf16.msra.mxu0 0
    %1329 = vmatprep.mubr.bf16.mxu0 0
    %1330 = vmatmul.mubr.bf16.gmra.mrb[0].mxu0 %v1232
    %v1331 = vpop.f32.mrb[0].mxu0
    %v1332 = vadd.f32 0.0, %v1331
    %v1333 = vpop.f32.mrb[0].mxu0
    %v1334 = vpop.f32.mrb[0].mxu0
    %v1335 = vpop.f32.mrb[0].mxu0
    %1336 = vdwg.mxu0
    %v1337 = vld [vmem:[%s4] sm:$0x3]
    %vm1338 = vcmask 140288
    %1339 = vst.msk [vmem:[#allocation3] sm:$0x3] %vm1338, 0.0
    %1341 = vrot.lane.b32.xlu0 %v1337, 1
    %v1342 = vpop.permute.xlu0 %1341
    %vm1344 = vcmask 132104
    %1345 = vst.msk [vmem:[#allocation3] sm:$0x3] %vm1344, %v1342
    %v1346 = vld [vmem:[#allocation3] sm:$0x3]
    %v1347 = vlaneseq
    %v1348 = vshrl.u32 %v1347, 7
    %v1349 = vsub.s32 0, %v1348
    %v1350 = vrot.slane %v1346, %v1349
    %1352 = vbcast.lane.b32.xlu0 %v1350, 256
    %v1353 = vpop.permute.xlu0 %1352
    %s1355 = sor.u32 256, 8
    %1356 = vbcast.lane.b32.xlu0 %v1350, %s1355
    %v1357 = vpop.permute.xlu0 %1356
    %v1358 = vlaneseq
    %v1359 = vshrl.u32 %v1358, 7
    %v1360 = vsub.s32 1, %v1359
    %v1361 = vrot.slane %v1346, %v1360
    %1363 = vbcast.lane.b32.xlu0 %v1361, 256
    %v1364 = vpop.permute.xlu0 %1363
    %s1366 = sor.u32 256, 8
    %1367 = vbcast.lane.b32.xlu0 %v1361, %s1366
    %v1368 = vpop.permute.xlu0 %1367
    %v1369 = vld [vmem:[#allocation14] sm:$0x1]
    %v1370 = vlaneseq
    %v1371 = vshrl.u32 %v1370, 7
    %v1372 = vsub.s32 0, %v1371
    %v1373 = vrot.slane %v1369, %v1372
    %v1374 = vmul.f32 %v1353, %v1373
    %v1375 = vmul.f32 %v1357, %v1373
    %v1376 = vmul.f32 %v1364, %v1373
    %v1377 = vmul.f32 %v1368, %v1373
    %v1378 = vlaneseq
    %v1379 = vshrl.u32 %v1378, 7
    %v1380 = vsub.s32 0, %v1379
    %v1381 = vrot.slane %v1337, %v1380
    %1383 = vbcast.lane.b32.xlu0 %v1381, 256
    %v1384 = vpop.permute.xlu0 %1383
    %s1386 = sor.u32 256, 8
    %1387 = vbcast.lane.b32.xlu0 %v1381, %s1386
    %v1388 = vpop.permute.xlu0 %1387
    %v1389 = vlaneseq
    %v1390 = vshrl.u32 %v1389, 7
    %v1391 = vsub.s32 1, %v1390
    %v1392 = vrot.slane %v1337, %v1391
    %1394 = vbcast.lane.b32.xlu0 %v1392, 256
    %v1395 = vpop.permute.xlu0 %1394
    %s1397 = sor.u32 256, 8
    %1398 = vbcast.lane.b32.xlu0 %v1392, %s1397
    %v1399 = vpop.permute.xlu0 %1398
    %v1400 = vld [vmem:[#allocation14 + $0x1] sm:$0x1]
    %v1401 = vlaneseq
    %v1402 = vshrl.u32 %v1401, 7
    %v1403 = vsub.s32 0, %v1402
    %v1404 = vrot.slane %v1400, %v1403
    %v1405 = vmul.f32 %v1384, %v1404
    %v1406 = vmul.f32 %v1388, %v1404
    %v1407 = vmul.f32 %v1395, %v1404
    %v1408 = vmul.f32 %v1399, %v1404
    %v1409 = vadd.f32 %v1374, %v1405
    %v1410 = vadd.f32 %v1375, %v1406
    %v1411 = vadd.f32 %v1376, %v1407
    %v1412 = vadd.f32 %v1377, %v1408
    %s1414 = sor.u32 256, 2
    %1415 = vbcast.lane.b32.xlu0 %v1350, %s1414
    %v1416 = vpop.permute.xlu0 %1415
    %s1418 = sor.u32 256, 10
    %1419 = vbcast.lane.b32.xlu0 %v1350, %s1418
    %v1420 = vpop.permute.xlu0 %1419
    %s1422 = sor.u32 256, 2
    %1423 = vbcast.lane.b32.xlu0 %v1361, %s1422
    %v1424 = vpop.permute.xlu0 %1423
    %s1426 = sor.u32 256, 10
    %1427 = vbcast.lane.b32.xlu0 %v1361, %s1426
    %v1428 = vpop.permute.xlu0 %1427
    %v1429 = vld [vmem:[#allocation14 + $0x2] sm:$0x1]
    %v1430 = vlaneseq
    %v1431 = vshrl.u32 %v1430, 7
    %v1432 = vsub.s32 0, %v1431
    %v1433 = vrot.slane %v1429, %v1432
    %v1434 = vmul.f32 %v1416, %v1433
    %v1435 = vmul.f32 %v1420, %v1433
    %v1436 = vmul.f32 %v1424, %v1433
    %v1437 = vmul.f32 %v1428, %v1433
    %v1438 = vadd.f32 %v1409, %v1434
    %v1439 = vadd.f32 %v1410, %v1435
    %v1440 = vadd.f32 %v1411, %v1436
    %v1441 = vadd.f32 %v1412, %v1437
    %v1444 = vunpack.c.l.s4 1966171168
    %v1445 = vunpack.c.0.s8 %v1444
    %v1446 = vlaneseq
    %v1447 = vshrl.u32 %v1446, 7
    %v1448 = vsub.s32 %v1445, %v1447
    %v1449 = vrot.slane %v1332, %v1448
    %v1450 = vcombine.high %v1449, %v1449
    %v1452 = vunpack.c.l.s4 1966171168
    %v1453 = vunpack.c.0.s8 %v1452
    %v1454 = vlaneseq
    %v1455 = vshrl.u32 %v1454, 7
    %v1456 = vsub.s32 %v1453, %v1455
    %v1457 = vrot.slane %v1449, %v1456
    %v1459 = vunpack.c.l.s4 1966171168
    %v1460 = vunpack.c.0.s8 %v1459
    %v1461 = vlaneseq
    %v1462 = vshrl.u32 %v1461, 7
    %v1463 = vsub.s32 %v1460, %v1462
    %v1464 = vrot.slane %v1450, %v1463
    %v1465 = vld [vmem:[%s5] sm:$0xff]
    %v1466 = vld [vmem:[%s5 + $0x8] sm:$0xff]
    %v1467 = vld [vmem:[%s5 + $0x10] sm:$0xff]
    %v1468 = vld [vmem:[%s5 + $0x18] sm:$0xff]
    %v1469 = vlaneseq
    %v1470 = vshrl.u32 %v1469, 7
    %v1471 = vsub.s32 0, %v1470
    %v1472 = vrot.slane %v1457, %v1471
    %v1473 = vlaneseq
    %v1474 = vshrl.u32 %v1473, 7
    %v1475 = vsub.s32 0, %v1474
    %v1476 = vrot.slane %v1464, %v1475
    %v1479 = vadd.f32 %v1472, %v1465
    %v1480 = vadd.f32 %v1472, %v1466
    %v1481 = vadd.f32 %v1476, %v1467
    %v1482 = vadd.f32 %v1476, %v1468
    %v1483 = vadd.f32 %v1479, %v1438
    %v1484 = vadd.f32 %v1480, %v1439
    %v1485 = vadd.f32 %v1481, %v1440
    %v1486 = vadd.f32 %v1482, %v1441
    %v1487 = vld [vmem:[#allocation17] sm:$0x1]
    %v1489 = vlaneseq
    %v1490 = vshrl.u32 %v1489, 7
    %v1491 = vsub.s32 0, %v1490
    %v1492 = vrot.slane %v1487, %v1491
    %v1494 = vadd.f32 %v1483, %v1492
    %v1495 = vadd.f32 %v1484, %v1492
    %v1496 = vadd.f32 %v1485, %v1492
    %v1497 = vadd.f32 %v1486, %v1492
    %v1498 = vtanh.pop %v1494
    %v1499 = vtanh.pop %v1495
    %v1500 = vtanh.pop %v1496
    %v1501 = vtanh.pop %v1497
    %v1502 = vld [vmem:[#allocation15] sm:$0x1]
    %v1504 = vlaneseq
    %v1505 = vshrl.u32 %v1504, 7
    %v1506 = vsub.s32 0, %v1505
    %v1507 = vrot.slane %v1502, %v1506
    %v1509 = vmul.f32 %v1498, %v1507
    %v1510 = vmul.f32 %v1499, %v1507
    %v1511 = vmul.f32 %v1500, %v1507
    %v1512 = vmul.f32 %v1501, %v1507
    %1513 = vadd.xlane.f32.xlu0 %v1509
    %v1514 = vpop.xlane.xlu0 %1513
    %1515 = vadd.xlane.f32.xlu0 %v1510
    %v1516 = vpop.xlane.xlu0 %1515
    %1517 = vadd.xlane.f32.xlu0 %v1511
    %v1518 = vpop.xlane.xlu0 %1517
    %1519 = vadd.xlane.f32.xlu0 %v1512
    %v1520 = vpop.xlane.xlu0 %1519
    %v1521 = vld [vmem:[#allocation8] sm:$0x3]
    %vm1522 = vcmp.gt.f32.partialorder %v1521, 0.5
    %v1527 = vlaneseq
    %v1528 = vand.u32 %v1527, 127
    %v1529 = vlaneseq
    %v1530 = vshrl.u32 %v1529, 7
    %v1531 = vsub.s32 %v1528, %v1530
    %v1532 = vrot.slane %v1514, %v1531
    %v1533 = vadd.s32 %v1528, 4294967288
    %v1534 = vlaneseq
    %v1535 = vshrl.u32 %v1534, 7
    %v1536 = vsub.s32 %v1533, %v1535
    %v1537 = vrot.slane %v1516, %v1536
    %vm1538 = vcmask 130112
    %v1539 = vsel %vm1538, %v1537, %v1532
    %v1540 = vlaneseq
    %v1541 = vshrl.u32 %v1540, 7
    %v1542 = vsub.s32 %v1528, %v1541
    %v1543 = vrot.slane %v1518, %v1542
    %v1544 = vlaneseq
    %v1545 = vshrl.u32 %v1544, 7
    %v1546 = vsub.s32 %v1533, %v1545
    %v1547 = vrot.slane %v1520, %v1546
    %v1548 = vsel %vm1538, %v1547, %v1543
    %vm1549 = vcmask 1041409
    %v1550 = vsel %vm1549, %v1548, %v1539
    %v1552 = vsel %vm1522, %v1550, -1e+09
    %vm1553 = vcmask 123904
    %v1554 = vsel %vm1553, %v1552, -inf
    %1555 = vmax.xlane.f32.xlu0 %v1554
    %v1556 = vpop.xlane.xlu0 %1555
    %v1557 = vsub.f32 %v1552, %v1556
    %v1558 = vmul.f32 %v1557, 1.442695
    %v1559 = vpow.pop %v1558
    %v1560 = vsel %vm1553, %v1559, 0.0
    %1561 = vadd.xlane.f32.xlu0 %v1560
    %v1562 = vpop.xlane.xlu0 %1561
    %v1563 = vmax.f32 %v1562, 1e-06
    %v1564 = vrcp.pop %v1563
    %v1565 = vmul.f32 %v1559, %v1564
    %v1568 = vunpack.c.l.s4 1966171168
    %v1569 = vunpack.c.0.s8 %v1568
    %v1570 = vlaneseq
    %v1571 = vshrl.u32 %v1570, 7
    %v1572 = vsub.s32 %v1569, %v1571
    %v1573 = vrot.slane %v1565, %v1572
    %v1574 = vcombine.high %v1573, %v1573
    %v1576 = vunpack.c.l.s4 1966171168
    %v1577 = vunpack.c.0.s8 %v1576
    %v1578 = vlaneseq
    %v1579 = vshrl.u32 %v1578, 7
    %v1580 = vsub.s32 %v1577, %v1579
    %v1581 = vrot.slane %v1573, %v1580
    %v1583 = vunpack.c.l.s4 1966171168
    %v1584 = vunpack.c.0.s8 %v1583
    %v1585 = vlaneseq
    %v1586 = vshrl.u32 %v1585, 7
    %v1587 = vsub.s32 %v1584, %v1586
    %v1588 = vrot.slane %v1574, %v1587
    %v1591 = vpack.c.bf16 %v1581, %v1581
    %v1592 = vpack.c.bf16 %v1588, %v1588
    %v1593 = vld [vmem:[%s6] sm:$0xf]
    %v1594 = vld [vmem:[%s6 + $0x4] sm:$0xf]
    %v1595 = vld [vmem:[%s6 + $0x8] sm:$0xf]
    %v1596 = vld [vmem:[%s6 + $0xc] sm:$0xf]
    %v1599 = vunpack.c.l.b16 %v1593
    %v1600 = vunpack.c.l.b16 %v1594
    %v1601 = vpack.c.b16 %v1600, %v1599
    %vm1603 = vcmask 130048
    %v1605 = vsel %vm1603, %v1591, 0
    %1607 = vmatprep.subr.bf16.mxu0 0
    %1608 = vmatpush1.bf16.msra.mxu0 %v1601
    %1609 = vmatprep.subr.bf16.mxu0 0
    %1610 = vmatpush1.bf16.msra.mxu0 0
    %1611 = vmatprep.subr.bf16.mxu0 0
    %1612 = vmatpush1.bf16.msra.mxu0 0
    %1613 = vmatprep.subr.bf16.mxu0 0
    %1614 = vmatpush1.bf16.msra.mxu0 0
    %1615 = vmatprep.subr.bf16.mxu0 0
    %1616 = vmatpush1.bf16.msra.mxu0 0
    %1617 = vmatprep.subr.bf16.mxu0 0
    %1618 = vmatpush1.bf16.msra.mxu0 0
    %1619 = vmatprep.subr.bf16.mxu0 0
    %1620 = vmatpush1.bf16.msra.mxu0 0
    %1621 = vmatprep.subr.bf16.mxu0 0
    %1622 = vmatpush1.bf16.msra.mxu0 0
    %1623 = vmatprep.subr.bf16.mxu0 0
    %1624 = vmatpush1.bf16.msra.mxu0 0
    %1625 = vmatprep.subr.bf16.mxu0 0
    %1626 = vmatpush1.bf16.msra.mxu0 0
    %1627 = vmatprep.subr.bf16.mxu0 0
    %1628 = vmatpush1.bf16.msra.mxu0 0
    %1629 = vmatprep.subr.bf16.mxu0 0
    %1630 = vmatpush1.bf16.msra.mxu0 0
    %1631 = vmatprep.subr.bf16.mxu0 0
    %1632 = vmatpush1.bf16.msra.mxu0 0
    %1633 = vmatprep.subr.bf16.mxu0 0
    %1634 = vmatpush1.bf16.msra.mxu0 0
    %1635 = vmatprep.subr.bf16.mxu0 0
    %1636 = vmatpush1.bf16.msra.mxu0 0
    %1637 = vmatprep.subr.bf16.mxu0 0
    %1638 = vmatpush1.bf16.msra.mxu0 0
    %1639 = vmatprep.mubr.bf16.mxu0 0
    %1640 = vmatmul.mubr.bf16.gmra.mrb[0].mxu0 %v1605
    %v1641 = vpop.f32.mrb[0].mxu0
    %v1642 = vadd.f32 0.0, %v1641
    %v1643 = vpop.f32.mrb[0].mxu0
    %v1644 = vpop.f32.mrb[0].mxu0
    %v1645 = vpop.f32.mrb[0].mxu0
    %1646 = vdwg.mxu0
    %v1649 = vunpack.c.l.b16 %v1595
    %v1650 = vunpack.c.l.b16 %v1596
    %v1651 = vpack.c.b16 %v1650, %v1649
    %v1654 = vsel %vm1603, %v1592, 0
    %1656 = vmatprep.subr.bf16.mxu0 0
    %1657 = vmatpush1.bf16.msra.mxu0 %v1651
    %1658 = vmatprep.subr.bf16.mxu0 0
    %1659 = vmatpush1.bf16.msra.mxu0 0
    %1660 = vmatprep.subr.bf16.mxu0 0
    %1661 = vmatpush1.bf16.msra.mxu0 0
    %1662 = vmatprep.subr.bf16.mxu0 0
    %1663 = vmatpush1.bf16.msra.mxu0 0
    %1664 = vmatprep.subr.bf16.mxu0 0
    %1665 = vmatpush1.bf16.msra.mxu0 0
    %1666 = vmatprep.subr.bf16.mxu0 0
    %1667 = vmatpush1.bf16.msra.mxu0 0
    %1668 = vmatprep.subr.bf16.mxu0 0
    %1669 = vmatpush1.bf16.msra.mxu0 0
    %1670 = vmatprep.subr.bf16.mxu0 0
    %1671 = vmatpush1.bf16.msra.mxu0 0
    %1672 = vmatprep.subr.bf16.mxu0 0
    %1673 = vmatpush1.bf16.msra.mxu0 0
    %1674 = vmatprep.subr.bf16.mxu0 0
    %1675 = vmatpush1.bf16.msra.mxu0 0
    %1676 = vmatprep.subr.bf16.mxu0 0
    %1677 = vmatpush1.bf16.msra.mxu0 0
    %1678 = vmatprep.subr.bf16.mxu0 0
    %1679 = vmatpush1.bf16.msra.mxu0 0
    %1680 = vmatprep.subr.bf16.mxu0 0
    %1681 = vmatpush1.bf16.msra.mxu0 0
    %1682 = vmatprep.subr.bf16.mxu0 0
    %1683 = vmatpush1.bf16.msra.mxu0 0
    %1684 = vmatprep.subr.bf16.mxu0 0
    %1685 = vmatpush1.bf16.msra.mxu0 0
    %1686 = vmatprep.subr.bf16.mxu0 0
    %1687 = vmatpush1.bf16.msra.mxu0 0
    %1688 = vmatprep.mubr.bf16.mxu0 0
    %1689 = vmatmul.mubr.bf16.gmra.mrb[0].mxu0 %v1654
    %v1690 = vpop.f32.mrb[0].mxu0
    %v1691 = vadd.f32 0.0, %v1690
    %v1692 = vpop.f32.mrb[0].mxu0
    %v1693 = vpop.f32.mrb[0].mxu0
    %v1694 = vpop.f32.mrb[0].mxu0
    %1695 = vdwg.mxu0
    %v1698 = vrot.slane %v1691, 7
    %v1699 = vsel %vm1549, %v1698, %v1642
    %1701 = vst [vmem:[%s17] sm:$0x3] %v1699
    %1702 = vst.msk [vmem:[%s18] sm:$0x3] %vm1553, %v1565
    %v1704 = vrot.slane %v1227, 1
    %v1707 = vadd.f32 %v1642, %v1227
    %v1708 = vadd.f32 %v1691, %v1704
    %v1711 = vrot.slane %v1708, 7
    %v1712 = vsel %vm1549, %v1711, %v1707
    %1714 = vst [vmem:[%s19] sm:$0x3] %v1712
    // Predicated region
    $region98: #{decoder_step.2} parent=1 // pred_check
      _
    $region99: #{decoder_step.2} parent=1 // pred_check_branch
      %1716 = sbr.rel (0) target = $region101
    $region100: #{decoder_step.2} parent=1 // pred_region
      _
    $region101: #{decoder_step.2} parent=1 // pred_fallthru
      _
    // Predicated region
    $region102: #{decoder_step.2} parent=1 // pred_check
      _
    $region103: #{decoder_step.2} parent=1 // pred_check_branch
      %1718 = sbr.rel (0) target = $region105
    $region104: #{decoder_step.2} parent=1 // pred_region
      _
    $region105: #{decoder_step.2} parent=1 // pred_fallthru
      _
    // Predicated region
    $region106: #{decoder_step.2} parent=1 // pred_check
      _
    $region107: #{decoder_step.2} parent=1 // pred_check_branch
      %1720 = sbr.rel (0) target = $region109
    $region108: #{decoder_step.2} parent=1 // pred_region
      _
    $region109: #{decoder_step.2} parent=1 // pred_fallthru
      _
    // Predicated region
    $region110: #{decoder_step.2} parent=1 // pred_check
      _
    $region111: #{decoder_step.2} parent=1 // pred_check_branch
      %1722 = sbr.rel (0) target = $region113
    $region112: #{decoder_step.2} parent=1 // pred_region
      _
    $region113: #{decoder_step.2} parent=1 // pred_fallthru
      _
    // Predicated region
    $region114: #{decoder_step.2} parent=1 // pred_check
      _
    $region115: #{decoder_step.2} parent=1 // pred_check_branch
      %1724 = sbr.rel (0) target = $region117
    $region116: #{decoder_step.2} parent=1 // pred_region
      _
    $region117: #{decoder_step.2} parent=1 // pred_fallthru
      _
    // Predicated region
    $region118: #{decoder_step.2} parent=1 // pred_check
      _
    $region119: #{decoder_step.2} parent=1 // pred_check_branch
      %1726 = sbr.rel (0) target = $region121
    $region120: #{decoder_step.2} parent=1 // pred_region
      _
    $region121: #{decoder_step.2} parent=1 // pred_fallthru
      _
    // Predicated region
    $region122: #{decoder_step.2} parent=1 // pred_check
      _
    $region123: #{decoder_step.2} parent=1 // pred_check_branch
      %1728 = sbr.rel (0) target = $region125
    $region124: #{decoder_step.2} parent=1 // pred_region
      _
    $region125: #{decoder_step.2} parent=1 // pred_fallthru
      _
    // Predicated region
    $region126: #{decoder_step.2} parent=1 // pred_check
      _
    $region127: #{decoder_step.2} parent=1 // pred_check_branch
      %1730 = sbr.rel (0) target = $region129
    $region128: #{decoder_step.2} parent=1 // pred_region
      _
    $region129: #{decoder_step.2} parent=1 // pred_fallthru
      _
    // Predicated region
    $region130: #{decoder_step.2} parent=1 // pred_check
      _
    $region131: #{decoder_step.2} parent=1 // pred_check_branch
      %1732 = sbr.rel (0) target = $region133
    $region132: #{decoder_step.2} parent=1 // pred_region
      _
    $region133: #{decoder_step.2} parent=1 // pred_fallthru
      _
    // Predicated region
    $region134: #{decoder_step.2} parent=1 // pred_check
      _
    $region135: #{decoder_step.2} parent=1 // pred_check_branch
      %1734 = sbr.rel (0) target = $region137
    $region136: #{decoder_step.2} parent=1 // pred_region
      _
    $region137: #{decoder_step.2} parent=1 // pred_fallthru
      _
    %1735 = vsyncpa [#allocation6], 1
    %1736 = vsyncpa [#allocation10], 1
    %1737 = vsyncpa [#allocation13], 1
    %1738 = vsyncpa [#allocation16], 1
    %1739 = vsyncpa [#allocation7], 1
  %1740 = vsyncmov [#allocation4]
  %s1741 = vpop.sfrf %1740
  %p1742 = scmp.eq.s32.totalorder %s1741, 0
  %p1743 = pneg %p1742
  %1745 = shalt.err (%p1743)
  %s1746 = scalar_lea.sflag [#allocation4], 1
  %1747 = vsyncmov %s1746
  %s1748 = vpop.sfrf %1747
  %p1749 = scmp.eq.s32.totalorder %s1748, 0
  %p1750 = pneg %p1749
  %1752 = shalt.err (%p1750)

</llo_original>
